<compile_context>
chip_gen: v6e
topology: v6e:2x2x1
jax: 0.10.0
libtpu: 0.0.40
codegen_flags: <defaults>
</compile_context>

<pallas_src>
import functools

import jax
import jax.numpy as jnp
from jax.experimental import pallas as pl
from jax.experimental.pallas import tpu as pltpu


# -----------------------------------------------------------------------------
# Pallas kernel: one grid step per batch chunk of TB elements.
# -----------------------------------------------------------------------------
def _vin2param_kernel(x_ref,
                      w0_ref, b0_ref,
                      w1_ref, b1_ref,
                      w2_ref, b2_ref,
                      wh_ref, bh_ref,
                      out_ref,
                      *, tb, lp, l_valid):
    m = tb * lp  # rows in the flattened (time-major) activation slab

    def conv_layer(h, w_ref, b_ref, relu):
        # h: (m, Cin) bf16, time-major rows (t * tb + b).
        # w_ref: (K, Cin, Cout) bf16, b_ref: (1, Cout) f32.
        # Output row (t, b) = sum_k  (h @ w[k]) at row (t + k, b)
        #                   = sum_k  roll(h @ w[k], shift = m - k*tb, axis=0).
        k_taps = w_ref.shape[0]
        acc = jnp.dot(h, w_ref[0], preferred_element_type=jnp.float32)
        for k in range(1, k_taps):                      # static unroll over taps
            tap = jnp.dot(h, w_ref[k], preferred_element_type=jnp.float32)
            acc = acc + pltpu.roll(tap, shift=m - k * tb, axis=0)
        acc = acc + b_ref[...]
        if relu:
            acc = jnp.maximum(acc, 0.0)
        return acc

    h = conv_layer(x_ref[...], w0_ref, b0_ref, relu=True).astype(jnp.bfloat16)
    h = conv_layer(h, w1_ref, b1_ref, relu=True).astype(jnp.bfloat16)
    h2 = conv_layer(h, w2_ref, b2_ref, relu=False)      # (m, C2) float32

    # Max-pool over the l_valid valid time positions of every batch row.
    # Rows [t*tb, (t+1)*tb) are position t of all tb elements -> aligned slices.
    pooled = h2[0:tb, :]
    for t in range(1, l_valid):
        pooled = jnp.maximum(pooled, h2[t * tb:(t + 1) * tb, :])

    # Fused (brand | model | color) heads: one lane-dense (tb, 128) matmul/store.
    out_ref[...] = (jnp.dot(pooled.astype(jnp.bfloat16), wh_ref[...],
                            preferred_element_type=jnp.float32) + bh_ref[...])


# -----------------------------------------------------------------------------
# Wrapper
# -----------------------------------------------------------------------------
def vin2param_conv(tokens, params, *, block_batch=128):
    emb = params["emb"]
    w0, b0 = params["w0"], params["b0"]
    w1, b1 = params["w1"], params["b1"]
    w2, b2 = params["w2"], params["b2"]
    wb, bb = params["wb"], params["bb"]
    wm, bm = params["wm"], params["bm"]
    wc, bc = params["wc"], params["bc"]

    B, L = tokens.shape
    E = emb.shape[1]
    k0, k1, k2 = w0.shape[0], w1.shape[0], w2.shape[0]
    l_valid = L - (k0 - 1) - (k1 - 1) - (k2 - 1)        # final conv output length
    assert l_valid >= 1, "sequence too short for the conv stack"

    lp = ((L + 7) // 8) * 8                             # per-element padded length
    tb = max(1, min(block_batch, B))
    if B > 1 and pl.cdiv(B, tb) < 2:
        tb = pl.cdiv(B, 2)                              # >=2 chunks -> both v7x TCs busy
    chunks = pl.cdiv(B, tb)
    b_pad = chunks * tb

    # ---- plain-JAX glue: embedding gather + time-major flattened layout -------
    x = jnp.take(emb, tokens, axis=0)                   # (B, L, E) f32
    x = jnp.pad(x, ((0, b_pad - B), (0, lp - L), (0, 0)))
    x = x.reshape(chunks, tb, lp, E).transpose(0, 2, 1, 3)   # (chunks, Lp, tb, E)
    x_flat = x.reshape(chunks * lp * tb, E).astype(jnp.bfloat16)

    # ---- fused, 128-lane-padded classification heads ---------------------------
    nb, nm, nc = wb.shape[1], wm.shape[1], wc.shape[1]
    nh = nb + nm + nc
    nh_pad = ((nh + 127) // 128) * 128
    wh = jnp.pad(jnp.concatenate([wb, wm, wc], axis=1),
                 ((0, 0), (0, nh_pad - nh))).astype(jnp.bfloat16)
    bh = jnp.pad(jnp.concatenate([bb, bm, bc], axis=1),
                 ((0, 0), (0, nh_pad - nh))).astype(jnp.float32)

    weights = [w0.astype(jnp.bfloat16), b0.astype(jnp.float32),
               w1.astype(jnp.bfloat16), b1.astype(jnp.float32),
               w2.astype(jnp.bfloat16), b2.astype(jnp.float32),
               wh, bh]

    def const_spec(a):
        nd = a.ndim
        return pl.BlockSpec(a.shape, lambda i, _nd=nd: (0,) * _nd)

    kernel = functools.partial(_vin2param_kernel, tb=tb, lp=lp, l_valid=l_valid)

    out = pl.pallas_call(
        kernel,
        grid=(chunks,),
        in_specs=[pl.BlockSpec((lp * tb, E), lambda i: (i, 0))] +
                 [const_spec(w) for w in weights],
        out_specs=pl.BlockSpec((tb, nh_pad), lambda i: (i, 0)),
        out_shape=jax.ShapeDtypeStruct((b_pad, nh_pad), jnp.float32),
        compiler_params=pltpu.CompilerParams(
            dimension_semantics=("parallel",)),
    )(x_flat, *weights)

    brand = out[:B, 0:nb]
    model = out[:B, nb:nb + nm]
    color = out[:B, nb + nm:nb + nm + nc]
    return brand, model, color


# -----------------------------------------------------------------------------
# Pure-JAX reference mirroring the PyTorch forward (same bf16 operand precision
# as the kernel, f32 accumulation) for the correctness check.
# -----------------------------------------------------------------------------
def _conv_ref(h_bf16, w, b, relu):
    K, _, cout = w.shape
    lout = h_bf16.shape[1] - K + 1
    acc = jnp.zeros((h_bf16.shape[0], lout, cout), jnp.float32)
    w16 = w.astype(jnp.bfloat16)
    for k in range(K):
        acc = acc + jnp.einsum("ble,eo->blo", h_bf16[:, k:k + lout, :], w16[k],
                               preferred_element_type=jnp.float32)
    acc = acc + b[None]
    return jnp.maximum(acc, 0.0) if relu else acc


def vin2param_reference(tokens, params):
    x = jnp.take(params["emb"], tokens, axis=0).astype(jnp.bfloat16)  # (B, L, E)
    h = _conv_ref(x, params["w0"], params["b0"], True).astype(jnp.bfloat16)
    h = _conv_ref(h, params["w1"], params["b1"], True).astype(jnp.bfloat16)
    h = _conv_ref(h, params["w2"], params["b2"], False)               # f32
    pooled = jnp.max(h, axis=1).astype(jnp.bfloat16)                  # (B, C2)

    def head(w, b):
        return jnp.einsum("bc,co->bo", pooled, w.astype(jnp.bfloat16),
                          preferred_element_type=jnp.float32) + b

    return (head(params["wb"], params["bb"]),
            head(params["wm"], params["bm"]),
            head(params["wc"], params["bc"]))


# -----------------------------------------------------------------------------
# Deterministic parameter init + run
# -----------------------------------------------------------------------------
def init_params(key, inp_size, emb_size, pad_id,
                c0, c1, c2, carbrand_n, carmodel_n, color_n):
    ks = jax.random.split(key, 13)
    s = 0.1

    def rnd(k, shape):
        return jax.random.normal(k, shape, dtype=jnp.float32) * s

    emb = rnd(ks[0], (inp_size, emb_size))
    emb = emb.at[pad_id].set(0.0)  # nn.Embedding padding_idx semantics

    return {
        "emb": emb,
        # conv weights in (K, Cin, Cout)  (= PyTorch (Cout, Cin, K).transpose(2,1,0))
        "w0": rnd(ks[1], (5, emb_size, c0)), "b0": rnd(ks[2], (1, c0)),
        "w1": rnd(ks[3], (3, c0, c1)),       "b1": rnd(ks[4], (1, c1)),
        "w2": rnd(ks[5], (3, c1, c2)),       "b2": rnd(ks[6], (1, c2)),
        # linear weights in (Cin, Cout)  (= PyTorch weight.T)
        "wb": rnd(ks[7], (c2, carbrand_n)),  "bb": rnd(ks[8], (1, carbrand_n)),
        "wm": rnd(ks[9], (c2, carmodel_n)),  "bm": rnd(ks[10], (1, carmodel_n)),
        "wc": rnd(ks[11], (c2, color_n)),    "bc": rnd(ks[12], (1, color_n)),
    }


if __name__ == "__main__":
    # Model hyper-parameters (small, consistent with the module's __init__).
    INP_SIZE = 40      # VIN character vocabulary
    EMB_SIZE = 32
    PAD_ID = 0
    CONV0, CONV1, CONV2 = 32, 64, 64
    CARBRAND_N, CARMODEL_N, COLOR_N = 16, 32, 8

    B, L = 12, 17      # 12 VINs of 17 characters -> 2 batch chunks of 8 (with padding)

    key = jax.random.PRNGKey(0)
    k_params, k_tok = jax.random.split(key)

    params = init_params(k_params, INP_SIZE, EMB_SIZE, PAD_ID,
                         CONV0, CONV1, CONV2,
                         CARBRAND_N, CARMODEL_N, COLOR_N)

    tokens = jax.random.randint(k_tok, (B, L), 1, INP_SIZE, dtype=jnp.int32)
    tokens = tokens.at[0, -3:].set(PAD_ID)  # include some padding tokens

    brand, model, color = vin2param_conv(tokens, params, block_batch=8)
    jax.block_until_ready((brand, model, color))

    ref_brand, ref_model, ref_color = vin2param_reference(tokens, params)

    assert brand.shape == (B, CARBRAND_N)
    assert model.shape == (B, CARMODEL_N)
    assert color.shape == (B, COLOR_N)
    assert jnp.allclose(brand, ref_brand, rtol=1e-2, atol=1e-3)
    assert jnp.allclose(model, ref_model, rtol=1e-2, atol=1e-3)
    assert jnp.allclose(color, ref_color, rtol=1e-2, atol=1e-3)

    print("KERNEL_OK")
</pallas_src>

<mosaic_0001>
module attributes {stable_mosaic.version = 11 : i64} {
  func.func @_vin2param_kernel(%arg0: i32, %arg1: memref<192x32xbf16, #tpu.memory_space<vmem>>, %arg2: memref<5x32x32xbf16, #tpu.memory_space<vmem>>, %arg3: memref<1x32xf32, #tpu.memory_space<vmem>>, %arg4: memref<3x32x64xbf16, #tpu.memory_space<vmem>>, %arg5: memref<1x64xf32, #tpu.memory_space<vmem>>, %arg6: memref<3x64x64xbf16, #tpu.memory_space<vmem>>, %arg7: memref<1x64xf32, #tpu.memory_space<vmem>>, %arg8: memref<64x128xbf16, #tpu.memory_space<vmem>>, %arg9: memref<1x128xf32, #tpu.memory_space<vmem>>, %arg10: memref<8x128xf32, #tpu.memory_space<vmem>>) attributes {dimension_semantics = [#tpu.dimension_semantics<parallel>], iteration_bounds = array<i64: 2>, scalar_prefetch = 0 : i64, scratch_operands = 0 : i64, tpu.core_type = #tpu.core_type<tc>, window_params = [{transform_indices = @transform_0, window_bounds = array<i64: 192, 32>}, {pipeline_mode = #tpu.pipeline_mode<synchronous>, transform_indices = @transform_1, window_bounds = array<i64: 5, 32, 32>}, {pipeline_mode = #tpu.pipeline_mode<synchronous>, transform_indices = @transform_2, window_bounds = array<i64: 1, 32>}, {pipeline_mode = #tpu.pipeline_mode<synchronous>, transform_indices = @transform_3, window_bounds = array<i64: 3, 32, 64>}, {pipeline_mode = #tpu.pipeline_mode<synchronous>, transform_indices = @transform_4, window_bounds = array<i64: 1, 64>}, {pipeline_mode = #tpu.pipeline_mode<synchronous>, transform_indices = @transform_5, window_bounds = array<i64: 3, 64, 64>}, {pipeline_mode = #tpu.pipeline_mode<synchronous>, transform_indices = @transform_6, window_bounds = array<i64: 1, 64>}, {pipeline_mode = #tpu.pipeline_mode<synchronous>, transform_indices = @transform_7, window_bounds = array<i64: 64, 128>}, {pipeline_mode = #tpu.pipeline_mode<synchronous>, transform_indices = @transform_8, window_bounds = array<i64: 1, 128>}, {transform_indices = @transform_9, window_bounds = array<i64: 8, 128>}]} {
    %c0 = arith.constant 0 : index
    %c0_0 = arith.constant 0 : index
    %0 = vector.load %arg1[%c0, %c0_0] : memref<192x32xbf16, #tpu.memory_space<vmem>>, vector<192x32xbf16>
    %c0_1 = arith.constant 0 : index
    %c0_2 = arith.constant 0 : index
    %c0_3 = arith.constant 0 : index
    %1 = vector.load %arg2[%c0_1, %c0_2, %c0_3] : memref<5x32x32xbf16, #tpu.memory_space<vmem>>, vector<1x32x32xbf16>
    %2 = vector.shape_cast %1 : vector<1x32x32xbf16> to vector<32x32xbf16>
    %cst = arith.constant dense<0.000000e+00> : vector<192x32xf32>
    %3 = tpu.matmul %0, %2, %cst {dimension_numbers = #tpu.dot_dimension_numbers<[1], [0], [0], [1], [0, 0, 1, 1], [], []>} : vector<192x32xbf16>, vector<32x32xbf16>, vector<192x32xf32> -> vector<192x32xf32>
    %c1 = arith.constant 1 : index
    %c0_4 = arith.constant 0 : index
    %c0_5 = arith.constant 0 : index
    %4 = vector.load %arg2[%c1, %c0_4, %c0_5] : memref<5x32x32xbf16, #tpu.memory_space<vmem>>, vector<1x32x32xbf16>
    %5 = vector.shape_cast %4 : vector<1x32x32xbf16> to vector<32x32xbf16>
    %cst_6 = arith.constant dense<0.000000e+00> : vector<192x32xf32>
    %6 = tpu.matmul %0, %5, %cst_6 {dimension_numbers = #tpu.dot_dimension_numbers<[1], [0], [0], [1], [0, 0, 1, 1], [], []>} : vector<192x32xbf16>, vector<32x32xbf16>, vector<192x32xf32> -> vector<192x32xf32>
    %c184_i32 = arith.constant 184 : i32
    %7 = tpu.dynamic_rotate %6 by %c184_i32 dim 0 : vector<192x32xf32>, i32 -> vector<192x32xf32>
    %8 = arith.addf %3, %7 : vector<192x32xf32>
    %c2 = arith.constant 2 : index
    %c0_7 = arith.constant 0 : index
    %c0_8 = arith.constant 0 : index
    %9 = vector.load %arg2[%c2, %c0_7, %c0_8] : memref<5x32x32xbf16, #tpu.memory_space<vmem>>, vector<1x32x32xbf16>
    %10 = vector.shape_cast %9 : vector<1x32x32xbf16> to vector<32x32xbf16>
    %cst_9 = arith.constant dense<0.000000e+00> : vector<192x32xf32>
    %11 = tpu.matmul %0, %10, %cst_9 {dimension_numbers = #tpu.dot_dimension_numbers<[1], [0], [0], [1], [0, 0, 1, 1], [], []>} : vector<192x32xbf16>, vector<32x32xbf16>, vector<192x32xf32> -> vector<192x32xf32>
    %c176_i32 = arith.constant 176 : i32
    %12 = tpu.dynamic_rotate %11 by %c176_i32 dim 0 : vector<192x32xf32>, i32 -> vector<192x32xf32>
    %13 = arith.addf %8, %12 : vector<192x32xf32>
    %c3 = arith.constant 3 : index
    %c0_10 = arith.constant 0 : index
    %c0_11 = arith.constant 0 : index
    %14 = vector.load %arg2[%c3, %c0_10, %c0_11] : memref<5x32x32xbf16, #tpu.memory_space<vmem>>, vector<1x32x32xbf16>
    %15 = vector.shape_cast %14 : vector<1x32x32xbf16> to vector<32x32xbf16>
    %cst_12 = arith.constant dense<0.000000e+00> : vector<192x32xf32>
    %16 = tpu.matmul %0, %15, %cst_12 {dimension_numbers = #tpu.dot_dimension_numbers<[1], [0], [0], [1], [0, 0, 1, 1], [], []>} : vector<192x32xbf16>, vector<32x32xbf16>, vector<192x32xf32> -> vector<192x32xf32>
    %c168_i32 = arith.constant 168 : i32
    %17 = tpu.dynamic_rotate %16 by %c168_i32 dim 0 : vector<192x32xf32>, i32 -> vector<192x32xf32>
    %18 = arith.addf %13, %17 : vector<192x32xf32>
    %c4 = arith.constant 4 : index
    %c0_13 = arith.constant 0 : index
    %c0_14 = arith.constant 0 : index
    %19 = vector.load %arg2[%c4, %c0_13, %c0_14] : memref<5x32x32xbf16, #tpu.memory_space<vmem>>, vector<1x32x32xbf16>
    %20 = vector.shape_cast %19 : vector<1x32x32xbf16> to vector<32x32xbf16>
    %cst_15 = arith.constant dense<0.000000e+00> : vector<192x32xf32>
    %21 = tpu.matmul %0, %20, %cst_15 {dimension_numbers = #tpu.dot_dimension_numbers<[1], [0], [0], [1], [0, 0, 1, 1], [], []>} : vector<192x32xbf16>, vector<32x32xbf16>, vector<192x32xf32> -> vector<192x32xf32>
    %c160_i32 = arith.constant 160 : i32
    %22 = tpu.dynamic_rotate %21 by %c160_i32 dim 0 : vector<192x32xf32>, i32 -> vector<192x32xf32>
    %23 = arith.addf %18, %22 : vector<192x32xf32>
    %c0_16 = arith.constant 0 : index
    %c0_17 = arith.constant 0 : index
    %24 = vector.load %arg3[%c0_16, %c0_17] : memref<1x32xf32, #tpu.memory_space<vmem>>, vector<1x32xf32>
    %25 = vector.broadcast %24 : vector<1x32xf32> to vector<192x32xf32>
    %26 = arith.addf %23, %25 : vector<192x32xf32>
    %cst_18 = arith.constant 0.000000e+00 : f32
    %27 = vector.broadcast %cst_18 : f32 to vector<192x32xf32>
    %28 = arith.maximumf %26, %27 : vector<192x32xf32>
    %29 = arith.truncf %28 : vector<192x32xf32> to vector<192x32xbf16>
    %c0_19 = arith.constant 0 : index
    %c0_20 = arith.constant 0 : index
    %c0_21 = arith.constant 0 : index
    %30 = vector.load %arg4[%c0_19, %c0_20, %c0_21] : memref<3x32x64xbf16, #tpu.memory_space<vmem>>, vector<1x32x64xbf16>
    %31 = vector.shape_cast %30 : vector<1x32x64xbf16> to vector<32x64xbf16>
    %cst_22 = arith.constant dense<0.000000e+00> : vector<192x64xf32>
    %32 = tpu.matmul %29, %31, %cst_22 {dimension_numbers = #tpu.dot_dimension_numbers<[1], [0], [0], [1], [0, 0, 1, 1], [], []>} : vector<192x32xbf16>, vector<32x64xbf16>, vector<192x64xf32> -> vector<192x64xf32>
    %c1_23 = arith.constant 1 : index
    %c0_24 = arith.constant 0 : index
    %c0_25 = arith.constant 0 : index
    %33 = vector.load %arg4[%c1_23, %c0_24, %c0_25] : memref<3x32x64xbf16, #tpu.memory_space<vmem>>, vector<1x32x64xbf16>
    %34 = vector.shape_cast %33 : vector<1x32x64xbf16> to vector<32x64xbf16>
    %cst_26 = arith.constant dense<0.000000e+00> : vector<192x64xf32>
    %35 = tpu.matmul %29, %34, %cst_26 {dimension_numbers = #tpu.dot_dimension_numbers<[1], [0], [0], [1], [0, 0, 1, 1], [], []>} : vector<192x32xbf16>, vector<32x64xbf16>, vector<192x64xf32> -> vector<192x64xf32>
    %c184_i32_27 = arith.constant 184 : i32
    %36 = tpu.dynamic_rotate %35 by %c184_i32_27 dim 0 : vector<192x64xf32>, i32 -> vector<192x64xf32>
    %37 = arith.addf %32, %36 : vector<192x64xf32>
    %c2_28 = arith.constant 2 : index
    %c0_29 = arith.constant 0 : index
    %c0_30 = arith.constant 0 : index
    %38 = vector.load %arg4[%c2_28, %c0_29, %c0_30] : memref<3x32x64xbf16, #tpu.memory_space<vmem>>, vector<1x32x64xbf16>
    %39 = vector.shape_cast %38 : vector<1x32x64xbf16> to vector<32x64xbf16>
    %cst_31 = arith.constant dense<0.000000e+00> : vector<192x64xf32>
    %40 = tpu.matmul %29, %39, %cst_31 {dimension_numbers = #tpu.dot_dimension_numbers<[1], [0], [0], [1], [0, 0, 1, 1], [], []>} : vector<192x32xbf16>, vector<32x64xbf16>, vector<192x64xf32> -> vector<192x64xf32>
    %c176_i32_32 = arith.constant 176 : i32
    %41 = tpu.dynamic_rotate %40 by %c176_i32_32 dim 0 : vector<192x64xf32>, i32 -> vector<192x64xf32>
    %42 = arith.addf %37, %41 : vector<192x64xf32>
    %c0_33 = arith.constant 0 : index
    %c0_34 = arith.constant 0 : index
    %43 = vector.load %arg5[%c0_33, %c0_34] : memref<1x64xf32, #tpu.memory_space<vmem>>, vector<1x64xf32>
    %44 = vector.broadcast %43 : vector<1x64xf32> to vector<192x64xf32>
    %45 = arith.addf %42, %44 : vector<192x64xf32>
    %cst_35 = arith.constant 0.000000e+00 : f32
    %46 = vector.broadcast %cst_35 : f32 to vector<192x64xf32>
    %47 = arith.maximumf %45, %46 : vector<192x64xf32>
    %48 = arith.truncf %47 : vector<192x64xf32> to vector<192x64xbf16>
    %c0_36 = arith.constant 0 : index
    %c0_37 = arith.constant 0 : index
    %c0_38 = arith.constant 0 : index
    %49 = vector.load %arg6[%c0_36, %c0_37, %c0_38] : memref<3x64x64xbf16, #tpu.memory_space<vmem>>, vector<1x64x64xbf16>
    %50 = vector.shape_cast %49 : vector<1x64x64xbf16> to vector<64x64xbf16>
    %cst_39 = arith.constant dense<0.000000e+00> : vector<192x64xf32>
    %51 = tpu.matmul %48, %50, %cst_39 {dimension_numbers = #tpu.dot_dimension_numbers<[1], [0], [0], [1], [0, 0, 1, 1], [], []>} : vector<192x64xbf16>, vector<64x64xbf16>, vector<192x64xf32> -> vector<192x64xf32>
    %c1_40 = arith.constant 1 : index
    %c0_41 = arith.constant 0 : index
    %c0_42 = arith.constant 0 : index
    %52 = vector.load %arg6[%c1_40, %c0_41, %c0_42] : memref<3x64x64xbf16, #tpu.memory_space<vmem>>, vector<1x64x64xbf16>
    %53 = vector.shape_cast %52 : vector<1x64x64xbf16> to vector<64x64xbf16>
    %cst_43 = arith.constant dense<0.000000e+00> : vector<192x64xf32>
    %54 = tpu.matmul %48, %53, %cst_43 {dimension_numbers = #tpu.dot_dimension_numbers<[1], [0], [0], [1], [0, 0, 1, 1], [], []>} : vector<192x64xbf16>, vector<64x64xbf16>, vector<192x64xf32> -> vector<192x64xf32>
    %c184_i32_44 = arith.constant 184 : i32
    %55 = tpu.dynamic_rotate %54 by %c184_i32_44 dim 0 : vector<192x64xf32>, i32 -> vector<192x64xf32>
    %56 = arith.addf %51, %55 : vector<192x64xf32>
    %c2_45 = arith.constant 2 : index
    %c0_46 = arith.constant 0 : index
    %c0_47 = arith.constant 0 : index
    %57 = vector.load %arg6[%c2_45, %c0_46, %c0_47] : memref<3x64x64xbf16, #tpu.memory_space<vmem>>, vector<1x64x64xbf16>
    %58 = vector.shape_cast %57 : vector<1x64x64xbf16> to vector<64x64xbf16>
    %cst_48 = arith.constant dense<0.000000e+00> : vector<192x64xf32>
    %59 = tpu.matmul %48, %58, %cst_48 {dimension_numbers = #tpu.dot_dimension_numbers<[1], [0], [0], [1], [0, 0, 1, 1], [], []>} : vector<192x64xbf16>, vector<64x64xbf16>, vector<192x64xf32> -> vector<192x64xf32>
    %c176_i32_49 = arith.constant 176 : i32
    %60 = tpu.dynamic_rotate %59 by %c176_i32_49 dim 0 : vector<192x64xf32>, i32 -> vector<192x64xf32>
    %61 = arith.addf %56, %60 : vector<192x64xf32>
    %c0_50 = arith.constant 0 : index
    %c0_51 = arith.constant 0 : index
    %62 = vector.load %arg7[%c0_50, %c0_51] : memref<1x64xf32, #tpu.memory_space<vmem>>, vector<1x64xf32>
    %63 = vector.broadcast %62 : vector<1x64xf32> to vector<192x64xf32>
    %64 = arith.addf %61, %63 : vector<192x64xf32>
    %65 = vector.extract_strided_slice %64 {offsets = [0, 0], sizes = [8, 64], strides = [1, 1]} : vector<192x64xf32> to vector<8x64xf32>
    %66 = vector.extract_strided_slice %64 {offsets = [8, 0], sizes = [8, 64], strides = [1, 1]} : vector<192x64xf32> to vector<8x64xf32>
    %67 = arith.maximumf %65, %66 : vector<8x64xf32>
    %68 = vector.extract_strided_slice %64 {offsets = [16, 0], sizes = [8, 64], strides = [1, 1]} : vector<192x64xf32> to vector<8x64xf32>
    %69 = arith.maximumf %67, %68 : vector<8x64xf32>
    %70 = vector.extract_strided_slice %64 {offsets = [24, 0], sizes = [8, 64], strides = [1, 1]} : vector<192x64xf32> to vector<8x64xf32>
    %71 = arith.maximumf %69, %70 : vector<8x64xf32>
    %72 = vector.extract_strided_slice %64 {offsets = [32, 0], sizes = [8, 64], strides = [1, 1]} : vector<192x64xf32> to vector<8x64xf32>
    %73 = arith.maximumf %71, %72 : vector<8x64xf32>
    %74 = vector.extract_strided_slice %64 {offsets = [40, 0], sizes = [8, 64], strides = [1, 1]} : vector<192x64xf32> to vector<8x64xf32>
    %75 = arith.maximumf %73, %74 : vector<8x64xf32>
    %76 = vector.extract_strided_slice %64 {offsets = [48, 0], sizes = [8, 64], strides = [1, 1]} : vector<192x64xf32> to vector<8x64xf32>
    %77 = arith.maximumf %75, %76 : vector<8x64xf32>
    %78 = vector.extract_strided_slice %64 {offsets = [56, 0], sizes = [8, 64], strides = [1, 1]} : vector<192x64xf32> to vector<8x64xf32>
    %79 = arith.maximumf %77, %78 : vector<8x64xf32>
    %80 = vector.extract_strided_slice %64 {offsets = [64, 0], sizes = [8, 64], strides = [1, 1]} : vector<192x64xf32> to vector<8x64xf32>
    %81 = arith.maximumf %79, %80 : vector<8x64xf32>
    %82 = arith.truncf %81 : vector<8x64xf32> to vector<8x64xbf16>
    %c0_52 = arith.constant 0 : index
    %c0_53 = arith.constant 0 : index
    %83 = vector.load %arg8[%c0_52, %c0_53] : memref<64x128xbf16, #tpu.memory_space<vmem>>, vector<64x128xbf16>
    %cst_54 = arith.constant dense<0.000000e+00> : vector<8x128xf32>
    %84 = tpu.matmul %82, %83, %cst_54 {dimension_numbers = #tpu.dot_dimension_numbers<[1], [0], [0], [1], [0, 0, 1, 1], [], []>} : vector<8x64xbf16>, vector<64x128xbf16>, vector<8x128xf32> -> vector<8x128xf32>
    %c0_55 = arith.constant 0 : index
    %c0_56 = arith.constant 0 : index
    %85 = vector.load %arg9[%c0_55, %c0_56] : memref<1x128xf32, #tpu.memory_space<vmem>>, vector<1x128xf32>
    %86 = vector.broadcast %85 : vector<1x128xf32> to vector<8x128xf32>
    %87 = arith.addf %84, %86 : vector<8x128xf32>
    %c0_57 = arith.constant 0 : index
    %c0_58 = arith.constant 0 : index
    %88 = vector.load %arg10[%c0_57, %c0_58] : memref<8x128xf32, #tpu.memory_space<vmem>>, vector<8x128xf32>
    tpu.vector_store %arg10[%c0_57, %c0_58], %87 {strides = array<i32>} : memref<8x128xf32, #tpu.memory_space<vmem>>, vector<8x128xf32>,
    return
  }
  func.func @transform_0(%arg0: i32) -> (i32, i32) {
    %c0_i32 = arith.constant 0 : i32
    %c0_i32_0 = arith.constant 0 : i32
    return %arg0, %c0_i32 : i32, i32
  }
  func.func @transform_1(%arg0: i32) -> (i32, i32, i32) {
    %c0_i32 = arith.constant 0 : i32
    %c0_i32_0 = arith.constant 0 : i32
    %c0_i32_1 = arith.constant 0 : i32
    %c0_i32_2 = arith.constant 0 : i32
    return %c0_i32, %c0_i32_0, %c0_i32_1 : i32, i32, i32
  }
  func.func @transform_2(%arg0: i32) -> (i32, i32) {
    %c0_i32 = arith.constant 0 : i32
    %c0_i32_0 = arith.constant 0 : i32
    %c0_i32_1 = arith.constant 0 : i32
    return %c0_i32, %c0_i32_0 : i32, i32
  }
  func.func @transform_3(%arg0: i32) -> (i32, i32, i32) {
    %c0_i32 = arith.constant 0 : i32
    %c0_i32_0 = arith.constant 0 : i32
    %c0_i32_1 = arith.constant 0 : i32
    %c0_i32_2 = arith.constant 0 : i32
    return %c0_i32, %c0_i32_0, %c0_i32_1 : i32, i32, i32
  }
  func.func @transform_4(%arg0: i32) -> (i32, i32) {
    %c0_i32 = arith.constant 0 : i32
    %c0_i32_0 = arith.constant 0 : i32
    %c0_i32_1 = arith.constant 0 : i32
    return %c0_i32, %c0_i32_0 : i32, i32
  }
  func.func @transform_5(%arg0: i32) -> (i32, i32, i32) {
    %c0_i32 = arith.constant 0 : i32
    %c0_i32_0 = arith.constant 0 : i32
    %c0_i32_1 = arith.constant 0 : i32
    %c0_i32_2 = arith.constant 0 : i32
    return %c0_i32, %c0_i32_0, %c0_i32_1 : i32, i32, i32
  }
  func.func @transform_6(%arg0: i32) -> (i32, i32) {
    %c0_i32 = arith.constant 0 : i32
    %c0_i32_0 = arith.constant 0 : i32
    %c0_i32_1 = arith.constant 0 : i32
    return %c0_i32, %c0_i32_0 : i32, i32
  }
  func.func @transform_7(%arg0: i32) -> (i32, i32) {
    %c0_i32 = arith.constant 0 : i32
    %c0_i32_0 = arith.constant 0 : i32
    %c0_i32_1 = arith.constant 0 : i32
    return %c0_i32, %c0_i32_0 : i32, i32
  }
  func.func @transform_8(%arg0: i32) -> (i32, i32) {
    %c0_i32 = arith.constant 0 : i32
    %c0_i32_0 = arith.constant 0 : i32
    %c0_i32_1 = arith.constant 0 : i32
    return %c0_i32, %c0_i32_0 : i32, i32
  }
  func.func @transform_9(%arg0: i32) -> (i32, i32) {
    %c0_i32 = arith.constant 0 : i32
    %c0_i32_0 = arith.constant 0 : i32
    return %arg0, %c0_i32 : i32, i32
  }
}

</mosaic_0001>

<llo_original>
// kernel: tpu_custom_call.1
$region0: #{tpu_custom_call.1}
  #allocation0 [shape = 'u32[]', space=smem, size = 0x4, offset = 0x4, fixed_abs, tag = 'smem constant byte address 0x4 - core index']
  #allocation1 [shape = 'u32[144,128]{1,0:T(1,128)}', space=vmem, size = 0x12000, scoped, tag = 'internal scratch']
  %s0 = inlined_call_operand.vmem [shape: bf16[384,32], index: 0, kind: input, shape index: {}]
  %s1 = inlined_call_operand.vmem [shape: bf16[5,32,32], index: 1, kind: input, shape index: {}]
  %s2 = inlined_call_operand.vmem [shape: f32[1,32], index: 2, kind: input, shape index: {}]
  %s3 = inlined_call_operand.vmem [shape: bf16[3,32,64], index: 3, kind: input, shape index: {}]
  %s4 = inlined_call_operand.vmem [shape: f32[1,64], index: 4, kind: input, shape index: {}]
  %s5 = inlined_call_operand.vmem [shape: bf16[3,64,64], index: 5, kind: input, shape index: {}]
  %s6 = inlined_call_operand.vmem [shape: f32[1,64], index: 6, kind: input, shape index: {}]
  %s7 = inlined_call_operand.hbm [shape: bf16[64,128], index: 7, kind: input, shape index: {}]
  %s8 = inlined_call_operand.vmem [shape: f32[1,128], index: 8, kind: input, shape index: {}]
  %s9 = inlined_call_operand.hbm [shape: f32[16,128], index: 9, kind: output, shape index: {}]
  %s10 = sld [smem:[#allocation0]]
  $region73: #{tpu_custom_call.1} parent=0
    _
  %s12 = ssub.s32 1, %s10
  %s13 = scalar_select 0, %s12, %s10
  $region1: #{tpu_custom_call.1} parent=0
    #allocation2 [shape = 'u8[16384]{0}', space=vmem, size = 0x4000, scoped, tag = 'input window, operand 7, single buffered']
    #allocation3 [shape = 's32[2]{0}', space=sflag, size = 0x8, scoped, tag = 'scoped memory for tpu_custom_call.1']
    #allocation4 [shape = 's32[2]{0}', space=sflag, size = 0x8, scoped, tag = 'scoped memory for tpu_custom_call.1']
    #allocation5 [shape = 'u8[8192]{0}', space=vmem, size = 0x2000, scoped, tag = 'output window, operand 0']
    %14 = vsyncpa [#allocation3], 0
    %15 = vsyncpa [#allocation4], 0
    %s16 = scalar_lea.sflag [#allocation4], 1
    %17 = vsyncpa %s16, 0
    loop: start=0, step=1, limit=4
    $region2: #{tpu_custom_call.1} parent=1 // loop_pre_header
      _
    $region3: #{tpu_custom_call.1} parent=1 // loop_header
      %s19 = sphi 0, %s23
      %p20 = scmp.ge.s32.totalorder %s19, 4
      %s29 = sphi 0, %s31
      %s32 = sphi 0, %s29
      %s33 = sphi 0, %s32
      %s49 = sphi 0, %s33
      %s53 = sphi 0, %s53
      %s55 = sphi 0, %s53
      %s56 = sphi 0, %s55
      %s70 = sphi 0, %s56
      %s74 = sphi 0, %s74
      %s76 = sphi 0, %s74
      %s77 = sphi 0, %s76
      %s91 = sphi 0, %s77
      %s95 = sphi 0, %s95
      %s97 = sphi 0, %s95
      %s98 = sphi 0, %s97
      %s112 = sphi 0, %s98
      %s116 = sphi 0, %s116
      %s118 = sphi 0, %s116
      %s119 = sphi 0, %s118
      %s133 = sphi 0, %s119
      %s137 = sphi 0, %s137
      %s139 = sphi 0, %s137
      %s140 = sphi 0, %s139
      %s154 = sphi 0, %s140
      %s158 = sphi 0, %s158
      %s160 = sphi 0, %s158
      %s161 = sphi 0, %s160
      %s175 = sphi 0, %s161
      %s179 = sphi 0, %s179
      %s181 = sphi 0, %s179
      %s182 = sphi 0, %s181
      %s196 = sphi 0, %s182
      %s200 = sphi 0, %s200
      %s202 = sphi 0, %s200
      %s203 = sphi 0, %s202
      %s217 = sphi 0, %s203
      %s223 = sphi 0, %s225
      %s226 = sphi 0, %s223
      %s227 = sphi 0, %s226
      %s243 = sphi 0, %s227
    $region4: #{tpu_custom_call.1} parent=1 // loop_header_branch
      %22 = sbr.rel (%p20) target = $region8
    $region5: #{tpu_custom_call.1} parent=1 // loop_body
      %s24 = ssub.s32 %s19, 1
      %s25 = ssub.s32 %s19, 2
      %s26 = sadd.s32 %s19, 1
      %s27 = ssub.s32 %s19, %s26
      %p28 = scmp.eq.s32.totalorder %s27, 0
      %s30 = sadd.s32 %s29, 1
      %s31 = scalar_select %p28, %s29, %s30
      %p34 = pneg %p28
      %p35 = scmp.eq.s32.totalorder %s19, 1
      %p36 = por %p34, %p35
      %p37 = scmp.ne.s32.totalorder %s29, %s32
      %p38 = scmp.eq.s32.totalorder %s19, 0
      %p39 = por %p37, %p38
      %p40 = scmp.ne.s32.totalorder %s29, %s32
      %p41 = scmp.eq.s32.totalorder %s24, 1
      %p42 = por %p40, %p41
      %p43 = scmp.ne.s32.totalorder %s32, %s33
      %p44 = scmp.eq.s32.totalorder %s24, 0
      %p45 = por %p43, %p44
      %p46 = scmp.ne.s32.totalorder %s32, %s33
      %p47 = scmp.eq.s32.totalorder %s25, 1
      %p48 = por %p46, %p47
      %p50 = scmp.ne.s32.totalorder %s33, %s49
      %p51 = scmp.eq.s32.totalorder %s25, 0
      %p52 = por %p50, %p51
      %s54 = sadd.s32 %s53, 1
      %p57 = scmp.eq.s32.totalorder %s19, 1
      %p58 = scmp.ne.s32.totalorder %s53, %s55
      %p59 = scmp.eq.s32.totalorder %s19, 0
      %p60 = por %p58, %p59
      %p61 = scmp.ne.s32.totalorder %s53, %s55
      %p62 = scmp.eq.s32.totalorder %s24, 1
      %p63 = por %p61, %p62
      %p64 = scmp.ne.s32.totalorder %s55, %s56
      %p65 = scmp.eq.s32.totalorder %s24, 0
      %p66 = por %p64, %p65
      %p67 = scmp.ne.s32.totalorder %s55, %s56
      %p68 = scmp.eq.s32.totalorder %s25, 1
      %p69 = por %p67, %p68
      %p71 = scmp.ne.s32.totalorder %s56, %s70
      %p72 = scmp.eq.s32.totalorder %s25, 0
      %p73 = por %p71, %p72
      %s75 = sadd.s32 %s74, 1
      %p78 = scmp.eq.s32.totalorder %s19, 1
      %p79 = scmp.ne.s32.totalorder %s74, %s76
      %p80 = scmp.eq.s32.totalorder %s19, 0
      %p81 = por %p79, %p80
      %p82 = scmp.ne.s32.totalorder %s74, %s76
      %p83 = scmp.eq.s32.totalorder %s24, 1
      %p84 = por %p82, %p83
      %p85 = scmp.ne.s32.totalorder %s76, %s77
      %p86 = scmp.eq.s32.totalorder %s24, 0
      %p87 = por %p85, %p86
      %p88 = scmp.ne.s32.totalorder %s76, %s77
      %p89 = scmp.eq.s32.totalorder %s25, 1
      %p90 = por %p88, %p89
      %p92 = scmp.ne.s32.totalorder %s77, %s91
      %p93 = scmp.eq.s32.totalorder %s25, 0
      %p94 = por %p92, %p93
      %s96 = sadd.s32 %s95, 1
      %p99 = scmp.eq.s32.totalorder %s19, 1
      %p100 = scmp.ne.s32.totalorder %s95, %s97
      %p101 = scmp.eq.s32.totalorder %s19, 0
      %p102 = por %p100, %p101
      %p103 = scmp.ne.s32.totalorder %s95, %s97
      %p104 = scmp.eq.s32.totalorder %s24, 1
      %p105 = por %p103, %p104
      %p106 = scmp.ne.s32.totalorder %s97, %s98
      %p107 = scmp.eq.s32.totalorder %s24, 0
      %p108 = por %p106, %p107
      %p109 = scmp.ne.s32.totalorder %s97, %s98
      %p110 = scmp.eq.s32.totalorder %s25, 1
      %p111 = por %p109, %p110
      %p113 = scmp.ne.s32.totalorder %s98, %s112
      %p114 = scmp.eq.s32.totalorder %s25, 0
      %p115 = por %p113, %p114
      %s117 = sadd.s32 %s116, 1
      %p120 = scmp.eq.s32.totalorder %s19, 1
      %p121 = scmp.ne.s32.totalorder %s116, %s118
      %p122 = scmp.eq.s32.totalorder %s19, 0
      %p123 = por %p121, %p122
      %p124 = scmp.ne.s32.totalorder %s116, %s118
      %p125 = scmp.eq.s32.totalorder %s24, 1
      %p126 = por %p124, %p125
      %p127 = scmp.ne.s32.totalorder %s118, %s119
      %p128 = scmp.eq.s32.totalorder %s24, 0
      %p129 = por %p127, %p128
      %p130 = scmp.ne.s32.totalorder %s118, %s119
      %p131 = scmp.eq.s32.totalorder %s25, 1
      %p132 = por %p130, %p131
      %p134 = scmp.ne.s32.totalorder %s119, %s133
      %p135 = scmp.eq.s32.totalorder %s25, 0
      %p136 = por %p134, %p135
      %s138 = sadd.s32 %s137, 1
      %p141 = scmp.eq.s32.totalorder %s19, 1
      %p142 = scmp.ne.s32.totalorder %s137, %s139
      %p143 = scmp.eq.s32.totalorder %s19, 0
      %p144 = por %p142, %p143
      %p145 = scmp.ne.s32.totalorder %s137, %s139
      %p146 = scmp.eq.s32.totalorder %s24, 1
      %p147 = por %p145, %p146
      %p148 = scmp.ne.s32.totalorder %s139, %s140
      %p149 = scmp.eq.s32.totalorder %s24, 0
      %p150 = por %p148, %p149
      %p151 = scmp.ne.s32.totalorder %s139, %s140
      %p152 = scmp.eq.s32.totalorder %s25, 1
      %p153 = por %p151, %p152
      %p155 = scmp.ne.s32.totalorder %s140, %s154
      %p156 = scmp.eq.s32.totalorder %s25, 0
      %p157 = por %p155, %p156
      %s159 = sadd.s32 %s158, 1
      %p162 = scmp.eq.s32.totalorder %s19, 1
      %p163 = scmp.ne.s32.totalorder %s158, %s160
      %p164 = scmp.eq.s32.totalorder %s19, 0
      %p165 = por %p163, %p164
      %p166 = scmp.ne.s32.totalorder %s158, %s160
      %p167 = scmp.eq.s32.totalorder %s24, 1
      %p168 = por %p166, %p167
      %p169 = scmp.ne.s32.totalorder %s160, %s161
      %p170 = scmp.eq.s32.totalorder %s24, 0
      %p171 = por %p169, %p170
      %p172 = scmp.ne.s32.totalorder %s160, %s161
      %p173 = scmp.eq.s32.totalorder %s25, 1
      %p174 = por %p172, %p173
      %p176 = scmp.ne.s32.totalorder %s161, %s175
      %p177 = scmp.eq.s32.totalorder %s25, 0
      %p178 = por %p176, %p177
      %s180 = sadd.s32 %s179, 1
      %p183 = scmp.eq.s32.totalorder %s19, 1
      %p184 = scmp.ne.s32.totalorder %s179, %s181
      %p185 = scmp.eq.s32.totalorder %s19, 0
      %p186 = por %p184, %p185
      %p187 = scmp.ne.s32.totalorder %s179, %s181
      %p188 = scmp.eq.s32.totalorder %s24, 1
      %p189 = por %p187, %p188
      %p190 = scmp.ne.s32.totalorder %s181, %s182
      %p191 = scmp.eq.s32.totalorder %s24, 0
      %p192 = por %p190, %p191
      %p193 = scmp.ne.s32.totalorder %s181, %s182
      %p194 = scmp.eq.s32.totalorder %s25, 1
      %p195 = por %p193, %p194
      %p197 = scmp.ne.s32.totalorder %s182, %s196
      %p198 = scmp.eq.s32.totalorder %s25, 0
      %p199 = por %p197, %p198
      %s201 = sadd.s32 %s200, 1
      %p204 = scmp.eq.s32.totalorder %s19, 1
      %p205 = scmp.ne.s32.totalorder %s200, %s202
      %p206 = scmp.eq.s32.totalorder %s19, 0
      %p207 = por %p205, %p206
      %p208 = scmp.ne.s32.totalorder %s200, %s202
      %p209 = scmp.eq.s32.totalorder %s24, 1
      %p210 = por %p208, %p209
      %p211 = scmp.ne.s32.totalorder %s202, %s203
      %p212 = scmp.eq.s32.totalorder %s24, 0
      %p213 = por %p211, %p212
      %p214 = scmp.ne.s32.totalorder %s202, %s203
      %p215 = scmp.eq.s32.totalorder %s25, 1
      %p216 = por %p214, %p215
      %p218 = scmp.ne.s32.totalorder %s203, %s217
      %p219 = scmp.eq.s32.totalorder %s25, 0
      %p220 = por %p218, %p219
      %s221 = ssub.s32 %s19, %s26
      %p222 = scmp.eq.s32.totalorder %s221, 0
      %s224 = sadd.s32 %s223, 1
      %s225 = scalar_select %p222, %s223, %s224
      %p228 = pneg %p222
      %p229 = scmp.eq.s32.totalorder %s19, 1
      %p230 = por %p228, %p229
      %p231 = scmp.ne.s32.totalorder %s223, %s226
      %p232 = scmp.eq.s32.totalorder %s19, 0
      %p233 = por %p231, %p232
      %p234 = scmp.ne.s32.totalorder %s223, %s226
      %p235 = scmp.eq.s32.totalorder %s24, 1
      %p236 = por %p234, %p235
      %p237 = scmp.ne.s32.totalorder %s226, %s227
      %p238 = scmp.eq.s32.totalorder %s24, 0
      %p239 = por %p237, %p238
      %p240 = scmp.ne.s32.totalorder %s226, %s227
      %p241 = scmp.eq.s32.totalorder %s25, 1
      %p242 = por %p240, %p241
      %p244 = scmp.ne.s32.totalorder %s227, %s243
      %p245 = scmp.eq.s32.totalorder %s25, 0
      %p246 = por %p244, %p245
      %p247 = scmp.le.s32.totalorder 1, %s19
      %p248 = scmp.lt.s32.totalorder %s19, 3
      %p249 = pnand %p247, %p248
      %p250 = pneg %p249
      // Predicated region
      $region9: #{tpu_custom_call.1} parent=5 // pred_check
        _
      $region10: #{tpu_custom_call.1} parent=5 // pred_check_branch
        %252 = sbr.rel (%p249) target = $region12
      $region11: #{tpu_custom_call.1} parent=5 // pred_region
        %s253 = ssub.s32 %s19, 1
        // Predicated region
        $region13: #{tpu_custom_call.1} parent=11 // pred_check
          %p254 = pneg %p66
        $region14: #{tpu_custom_call.1} parent=11 // pred_check_branch
          %256 = sbr.rel (%p254) target = $region16
        $region15: #{tpu_custom_call.1} parent=11 // pred_region
          _
        $region16: #{tpu_custom_call.1} parent=11 // pred_fallthru
          _
        // Predicated region
        $region17: #{tpu_custom_call.1} parent=11 // pred_check
          %p257 = pneg %p87
        $region18: #{tpu_custom_call.1} parent=11 // pred_check_branch
          %259 = sbr.rel (%p257) target = $region20
        $region19: #{tpu_custom_call.1} parent=11 // pred_region
          _
        $region20: #{tpu_custom_call.1} parent=11 // pred_fallthru
          _
        // Predicated region
        $region21: #{tpu_custom_call.1} parent=11 // pred_check
          %p260 = pneg %p108
        $region22: #{tpu_custom_call.1} parent=11 // pred_check_branch
          %262 = sbr.rel (%p260) target = $region24
        $region23: #{tpu_custom_call.1} parent=11 // pred_region
          _
        $region24: #{tpu_custom_call.1} parent=11 // pred_fallthru
          _
        // Predicated region
        $region25: #{tpu_custom_call.1} parent=11 // pred_check
          %p263 = pneg %p129
        $region26: #{tpu_custom_call.1} parent=11 // pred_check_branch
          %265 = sbr.rel (%p263) target = $region28
        $region27: #{tpu_custom_call.1} parent=11 // pred_region
          _
        $region28: #{tpu_custom_call.1} parent=11 // pred_fallthru
          _
        // Predicated region
        $region29: #{tpu_custom_call.1} parent=11 // pred_check
          %p266 = pneg %p150
        $region30: #{tpu_custom_call.1} parent=11 // pred_check_branch
          %268 = sbr.rel (%p266) target = $region32
        $region31: #{tpu_custom_call.1} parent=11 // pred_region
          _
        $region32: #{tpu_custom_call.1} parent=11 // pred_fallthru
          _
        // Predicated region
        $region33: #{tpu_custom_call.1} parent=11 // pred_check
          %p269 = pneg %p171
        $region34: #{tpu_custom_call.1} parent=11 // pred_check_branch
          %271 = sbr.rel (%p269) target = $region36
        $region35: #{tpu_custom_call.1} parent=11 // pred_region
          _
        $region36: #{tpu_custom_call.1} parent=11 // pred_fallthru
          _
        // Predicated region
        $region37: #{tpu_custom_call.1} parent=11 // pred_check
          %p272 = pneg %p192
        $region38: #{tpu_custom_call.1} parent=11 // pred_check_branch
          %274 = sbr.rel (%p272) target = $region40
        $region39: #{tpu_custom_call.1} parent=11 // pred_region
          %s276 = ssub.s32 512, 512
          %277 = vsyncadd [#allocation3], %s276
          %s278 = sshll.u32 [#allocation2], 4
          %s279 = int_to_ptr.vmem [resolvable:$true] %s278
          %284 = dma.hbm_to_vmem [thread:$0]  %s7, 512, %s279, [#allocation3], 64, 64, 4
        $region40: #{tpu_custom_call.1} parent=11 // pred_fallthru
          _
        // Predicated region
        $region41: #{tpu_custom_call.1} parent=11 // pred_check
          %p285 = pneg %p213
        $region42: #{tpu_custom_call.1} parent=11 // pred_check_branch
          %287 = sbr.rel (%p285) target = $region44
        $region43: #{tpu_custom_call.1} parent=11 // pred_region
          _
        $region44: #{tpu_custom_call.1} parent=11 // pred_fallthru
          _
      $region12: #{tpu_custom_call.1} parent=5 // pred_fallthru
        _
      %p288 = scmp.lt.s32.totalorder %s19, 2
      // Predicated region
      $region45: #{tpu_custom_call.1} parent=5 // pred_check
        %p289 = pneg %p288
      $region46: #{tpu_custom_call.1} parent=5 // pred_check_branch
        %291 = sbr.rel (%p289) target = $region48
      $region47: #{tpu_custom_call.1} parent=5 // pred_region
        // Predicated region
        $region49: #{tpu_custom_call.1} parent=47 // pred_check
          %p292 = pneg %p39
        $region50: #{tpu_custom_call.1} parent=47 // pred_check_branch
          %294 = sbr.rel (%p292) target = $region52
        $region51: #{tpu_custom_call.1} parent=47 // pred_region
          %s295 = smul.u32 24, %s19
          %p296 = scmp.lt.s32.totalorder %s295, 47
          %s297 = scalar_select %p296, %s295, 47
          %s298 = smul.addr %s297, 4
          %s299 = scalar_lea.vmem %s0, %s298
          %s300 = smul.u32 24, %s19
        $region52: #{tpu_custom_call.1} parent=47 // pred_fallthru
          _
      $region48: #{tpu_custom_call.1} parent=5 // pred_fallthru
        _
      %p301 = scmp.le.s32.totalorder 1, %s19
      %p302 = scmp.lt.s32.totalorder %s19, 3
      %p303 = pnand %p301, %p302
      %p304 = pneg %p303
      // Predicated region
      $region53: #{tpu_custom_call.1} parent=5 // pred_check
        _
      $region54: #{tpu_custom_call.1} parent=5 // pred_check_branch
        %306 = sbr.rel (%p303) target = $region56
      $region55: #{tpu_custom_call.1} parent=5 // pred_region
        %s307 = ssub.s32 %s19, 1
        // Predicated region
        $region57: #{tpu_custom_call.1} parent=55 // pred_check
          %p308 = pneg %p192
        $region58: #{tpu_custom_call.1} parent=55 // pred_check_branch
          %310 = sbr.rel (%p308) target = $region60
        $region59: #{tpu_custom_call.1} parent=55 // pred_region
          %311 = dma.done [#allocation3], 512
        $region60: #{tpu_custom_call.1} parent=55 // pred_fallthru
          _
        %s312 = smul.u32 24, %s24
        %p313 = scmp.lt.s32.totalorder %s312, 47
        %s314 = scalar_select %p313, %s312, 47
        %s315 = smul.addr %s314, 4
        %s316 = scalar_lea.vmem %s0, %s315
        %p317 = pneg %p45
        %p318 = pneg %p42
        %p319 = pneg %p66
        %p320 = pneg %p63
        %p321 = pneg %p87
        %p322 = pneg %p84
        %p323 = pneg %p108
        %p324 = pneg %p105
        %p325 = pneg %p129
        %p326 = pneg %p126
        %p327 = pneg %p150
        %p328 = pneg %p147
        %p329 = pneg %p171
        %p330 = pneg %p168
        %p331 = pneg %p192
        %p332 = pneg %p189
        %p333 = pneg %p213
        %p334 = pneg %p210
        %p335 = pneg %p239
        %p336 = pneg %p236
        %s337 = sand.u32 %s226, 1
        %s338 = scalar_lea.sflag [#allocation4], %s337
        %s339 = sand.u32 %s226, 1
        %s340 = smul.addr %s339, 8
        %s341 = scalar_lea.vmem [#allocation5], %s340
        %s342 = smul.u32 24, %s24
        %p343 = scmp.lt.s32.totalorder %s342, 47
        %s344 = scalar_select %p343, %s342, 47
        %s345 = smul.addr %s344, 4
        %s346 = scalar_lea.vmem %s0, %s345
        %s347 = smul.u32 24, %s24
        %v349 = vld [vmem:[%s346] sm:$0xf]
        %v350 = vld [vmem:[%s346 + $0x4] sm:$0xf]
        %v351 = vld [vmem:[%s346 + $0x8] sm:$0xf]
        %v352 = vld [vmem:[%s346 + $0xc] sm:$0xf]
        %v353 = vld [vmem:[%s346 + $0x10] sm:$0xf]
        %v354 = vld [vmem:[%s346 + $0x14] sm:$0xf]
        %v355 = vld [vmem:[%s346 + $0x18] sm:$0xf]
        %v356 = vld [vmem:[%s346 + $0x1c] sm:$0xf]
        %v357 = vld [vmem:[%s346 + $0x20] sm:$0xf]
        %v358 = vld [vmem:[%s346 + $0x24] sm:$0xf]
        %v359 = vld [vmem:[%s346 + $0x28] sm:$0xf]
        %v360 = vld [vmem:[%s346 + $0x2c] sm:$0xf]
        %v361 = vld [vmem:[%s346 + $0x30] sm:$0xf]
        %v362 = vld [vmem:[%s346 + $0x34] sm:$0xf]
        %v363 = vld [vmem:[%s346 + $0x38] sm:$0xf]
        %v364 = vld [vmem:[%s346 + $0x3c] sm:$0xf]
        %v365 = vld [vmem:[%s346 + $0x40] sm:$0xf]
        %v366 = vld [vmem:[%s346 + $0x44] sm:$0xf]
        %v367 = vld [vmem:[%s346 + $0x48] sm:$0xf]
        %v368 = vld [vmem:[%s346 + $0x4c] sm:$0xf]
        %v369 = vld [vmem:[%s346 + $0x50] sm:$0xf]
        %v370 = vld [vmem:[%s346 + $0x54] sm:$0xf]
        %v371 = vld [vmem:[%s346 + $0x58] sm:$0xf]
        %v372 = vld [vmem:[%s346 + $0x5c] sm:$0xf]
        %v373 = vld [vmem:[%s1] sm:$0xf]
        %v374 = vld [vmem:[%s1 + $0x4] sm:$0xf]
        %v375 = vld [vmem:[%s1 + $0x8] sm:$0xf]
        %v376 = vld [vmem:[%s1 + $0xc] sm:$0xf]
        %s377 = scalar_lea.vmem %s1, 16
        %v378 = vld [vmem:[%s377] sm:$0xf]
        %v379 = vld [vmem:[%s377 + $0x4] sm:$0xf]
        %v380 = vld [vmem:[%s377 + $0x8] sm:$0xf]
        %v381 = vld [vmem:[%s377 + $0xc] sm:$0xf]
        %v406 = vunpack.c.l.b16 %v349
        %v407 = vunpack.c.l.b16 %v350
        %v408 = vunpack.c.l.b16 %v351
        %v409 = vunpack.c.l.b16 %v352
        %v410 = vunpack.c.l.b16 %v353
        %v411 = vunpack.c.l.b16 %v354
        %v412 = vunpack.c.l.b16 %v355
        %v413 = vunpack.c.l.b16 %v356
        %v414 = vunpack.c.l.b16 %v357
        %v415 = vunpack.c.l.b16 %v358
        %v416 = vunpack.c.l.b16 %v359
        %v417 = vunpack.c.l.b16 %v360
        %v418 = vunpack.c.l.b16 %v361
        %v419 = vunpack.c.l.b16 %v362
        %v420 = vunpack.c.l.b16 %v363
        %v421 = vunpack.c.l.b16 %v364
        %v422 = vunpack.c.l.b16 %v365
        %v423 = vunpack.c.l.b16 %v366
        %v424 = vunpack.c.l.b16 %v367
        %v425 = vunpack.c.l.b16 %v368
        %v426 = vunpack.c.l.b16 %v369
        %v427 = vunpack.c.l.b16 %v370
        %v428 = vunpack.c.l.b16 %v371
        %v429 = vunpack.c.l.b16 %v372
        %v430 = vpack.c.b16 %v407, %v406
        %v431 = vpack.c.b16 %v409, %v408
        %v432 = vpack.c.b16 %v411, %v410
        %v433 = vpack.c.b16 %v413, %v412
        %v434 = vpack.c.b16 %v415, %v414
        %v435 = vpack.c.b16 %v417, %v416
        %v436 = vpack.c.b16 %v419, %v418
        %v437 = vpack.c.b16 %v421, %v420
        %v438 = vpack.c.b16 %v423, %v422
        %v439 = vpack.c.b16 %v425, %v424
        %v440 = vpack.c.b16 %v427, %v426
        %v441 = vpack.c.b16 %v429, %v428
        %v446 = vunpack.c.l.b16 %v378
        %v447 = vunpack.c.l.b16 %v379
        %v448 = vunpack.c.l.b16 %v380
        %v449 = vunpack.c.l.b16 %v381
        %v450 = vpack.c.b16 %v447, %v446
        %v451 = vpack.c.b16 %v449, %v448
        %vm454 = vcmask 261120
        %v456 = vsel %vm454, %v430, 0
        %v459 = vsel %vm454, %v431, 0
        %v462 = vsel %vm454, %v432, 0
        %v465 = vsel %vm454, %v433, 0
        %v468 = vsel %vm454, %v434, 0
        %v471 = vsel %vm454, %v435, 0
        %v474 = vsel %vm454, %v436, 0
        %v477 = vsel %vm454, %v437, 0
        %v480 = vsel %vm454, %v438, 0
        %v483 = vsel %vm454, %v439, 0
        %v486 = vsel %vm454, %v440, 0
        %v489 = vsel %vm454, %v441, 0
        %491 = vmatprep.subr.bf16.mxu0 0
        %492 = vmatpush1.bf16.msra.mxu0 0
        %493 = vmatprep.subr.bf16.mxu0 0
        %494 = vmatpush1.bf16.msra.mxu0 0
        %495 = vmatprep.subr.bf16.mxu0 0
        %496 = vmatpush1.bf16.msra.mxu0 0
        %497 = vmatprep.subr.bf16.mxu0 0
        %498 = vmatpush1.bf16.msra.mxu0 0
        %499 = vmatprep.subr.bf16.mxu0 0
        %500 = vmatpush1.bf16.msra.mxu0 0
        %501 = vmatprep.subr.bf16.mxu0 0
        %502 = vmatpush1.bf16.msra.mxu0 0
        %503 = vmatprep.subr.bf16.mxu0 0
        %504 = vmatpush1.bf16.msra.mxu0 %v451
        %505 = vmatprep.subr.bf16.mxu0 0
        %506 = vmatpush1.bf16.msra.mxu0 %v450
        %507 = vmatprep.subr.bf16.mxu0 0
        %508 = vmatpush2.bf16.msra.mxu0 0
        %509 = vmatprep.subr.bf16.mxu0 0
        %510 = vmatpush2.bf16.msra.mxu0 0
        %511 = vmatprep.subr.bf16.mxu0 0
        %512 = vmatpush2.bf16.msra.mxu0 0
        %513 = vmatprep.subr.bf16.mxu0 0
        %514 = vmatpush2.bf16.msra.mxu0 0
        %515 = vmatprep.subr.bf16.mxu0 0
        %516 = vmatpush2.bf16.msra.mxu0 0
        %517 = vmatprep.subr.bf16.mxu0 0
        %518 = vmatpush2.bf16.msra.mxu0 0
        %519 = vmatprep.subr.bf16.mxu0 0
        %520 = vmatpush2.bf16.msra.mxu0 0
        %521 = vmatprep.subr.bf16.mxu0 0
        %522 = vmatpush2.bf16.msra.mxu0 0
        %523 = vmatprep.mubr.bf16.mxu0 0
        %524 = vmatmul.mubr.bf16.gmra.mxu0 %v456
        %v525 = vpop.f32.mrf.mxu0
        %v526 = vadd.f32 0.0, %v525
        %v527 = vpop.f32.mrf.mxu0
        %v528 = vpop.f32.mrf.mxu0
        %v529 = vadd.f32 0.0, %v528
        %v530 = vpop.f32.mrf.mxu0
        %531 = vmatprep.mubr.bf16.mxu0 0
        %532 = vmatmul.mubr.bf16.gmra.mxu0 %v459
        %v533 = vpop.f32.mrf.mxu0
        %v534 = vadd.f32 0.0, %v533
        %v535 = vpop.f32.mrf.mxu0
        %v536 = vpop.f32.mrf.mxu0
        %v537 = vadd.f32 0.0, %v536
        %v538 = vpop.f32.mrf.mxu0
        %539 = vmatprep.mubr.bf16.mxu0 0
        %540 = vmatmul.mubr.bf16.gmra.mxu0 %v462
        %v541 = vpop.f32.mrf.mxu0
        %v542 = vadd.f32 0.0, %v541
        %v543 = vpop.f32.mrf.mxu0
        %v544 = vpop.f32.mrf.mxu0
        %v545 = vadd.f32 0.0, %v544
        %v546 = vpop.f32.mrf.mxu0
        %547 = vmatprep.mubr.bf16.mxu0 0
        %548 = vmatmul.mubr.bf16.gmra.mxu0 %v465
        %v549 = vpop.f32.mrf.mxu0
        %v550 = vadd.f32 0.0, %v549
        %v551 = vpop.f32.mrf.mxu0
        %v552 = vpop.f32.mrf.mxu0
        %v553 = vadd.f32 0.0, %v552
        %v554 = vpop.f32.mrf.mxu0
        %555 = vmatprep.mubr.bf16.mxu0 0
        %556 = vmatmul.mubr.bf16.gmra.mxu0 %v468
        %v557 = vpop.f32.mrf.mxu0
        %v558 = vadd.f32 0.0, %v557
        %v559 = vpop.f32.mrf.mxu0
        %v560 = vpop.f32.mrf.mxu0
        %v561 = vadd.f32 0.0, %v560
        %v562 = vpop.f32.mrf.mxu0
        %563 = vmatprep.mubr.bf16.mxu0 0
        %564 = vmatmul.mubr.bf16.gmra.mxu0 %v471
        %v565 = vpop.f32.mrf.mxu0
        %v566 = vadd.f32 0.0, %v565
        %v567 = vpop.f32.mrf.mxu0
        %v568 = vpop.f32.mrf.mxu0
        %v569 = vadd.f32 0.0, %v568
        %v570 = vpop.f32.mrf.mxu0
        %571 = vmatprep.mubr.bf16.mxu0 0
        %572 = vmatmul.mubr.bf16.gmra.mxu0 %v474
        %v573 = vpop.f32.mrf.mxu0
        %v574 = vadd.f32 0.0, %v573
        %v575 = vpop.f32.mrf.mxu0
        %v576 = vpop.f32.mrf.mxu0
        %v577 = vadd.f32 0.0, %v576
        %v578 = vpop.f32.mrf.mxu0
        %579 = vmatprep.mubr.bf16.mxu0 0
        %580 = vmatmul.mubr.bf16.gmra.mxu0 %v477
        %v581 = vpop.f32.mrf.mxu0
        %v582 = vadd.f32 0.0, %v581
        %v583 = vpop.f32.mrf.mxu0
        %v584 = vpop.f32.mrf.mxu0
        %v585 = vadd.f32 0.0, %v584
        %v586 = vpop.f32.mrf.mxu0
        %587 = vmatprep.mubr.bf16.mxu0 0
        %588 = vmatmul.mubr.bf16.gmra.mxu0 %v480
        %v589 = vpop.f32.mrf.mxu0
        %v590 = vadd.f32 0.0, %v589
        %v591 = vpop.f32.mrf.mxu0
        %v592 = vpop.f32.mrf.mxu0
        %v593 = vadd.f32 0.0, %v592
        %v594 = vpop.f32.mrf.mxu0
        %595 = vmatprep.mubr.bf16.mxu0 0
        %596 = vmatmul.mubr.bf16.gmra.mxu0 %v483
        %v597 = vpop.f32.mrf.mxu0
        %v598 = vadd.f32 0.0, %v597
        %v599 = vpop.f32.mrf.mxu0
        %v600 = vpop.f32.mrf.mxu0
        %v601 = vadd.f32 0.0, %v600
        %v602 = vpop.f32.mrf.mxu0
        %603 = vmatprep.mubr.bf16.mxu0 0
        %604 = vmatmul.mubr.bf16.gmra.mxu0 %v486
        %v605 = vpop.f32.mrf.mxu0
        %v606 = vadd.f32 0.0, %v605
        %v607 = vpop.f32.mrf.mxu0
        %v608 = vpop.f32.mrf.mxu0
        %v609 = vadd.f32 0.0, %v608
        %v610 = vpop.f32.mrf.mxu0
        %611 = vmatprep.mubr.bf16.mxu0 0
        %612 = vmatmul.mubr.bf16.gmra.mxu0 %v489
        %v613 = vpop.f32.mrf.mxu0
        %v614 = vadd.f32 0.0, %v613
        %v615 = vpop.f32.mrf.mxu0
        %v616 = vpop.f32.mrf.mxu0
        %v617 = vadd.f32 0.0, %v616
        %v618 = vpop.f32.mrf.mxu0
        %619 = vdwg.mxu0
        %v624 = vunpack.c.l.b16 %v373
        %v625 = vunpack.c.l.b16 %v374
        %v626 = vunpack.c.l.b16 %v375
        %v627 = vunpack.c.l.b16 %v376
        %v628 = vpack.c.b16 %v625, %v624
        %v629 = vpack.c.b16 %v627, %v626
        %632 = vmatprep.subr.bf16.mxu0 0
        %633 = vmatpush1.bf16.msra.mxu0 0
        %634 = vmatprep.subr.bf16.mxu0 0
        %635 = vmatpush1.bf16.msra.mxu0 0
        %636 = vmatprep.subr.bf16.mxu0 0
        %637 = vmatpush1.bf16.msra.mxu0 0
        %638 = vmatprep.subr.bf16.mxu0 0
        %639 = vmatpush1.bf16.msra.mxu0 0
        %640 = vmatprep.subr.bf16.mxu0 0
        %641 = vmatpush1.bf16.msra.mxu0 0
        %642 = vmatprep.subr.bf16.mxu0 0
        %643 = vmatpush1.bf16.msra.mxu0 0
        %644 = vmatprep.subr.bf16.mxu0 0
        %645 = vmatpush1.bf16.msra.mxu0 %v629
        %646 = vmatprep.subr.bf16.mxu0 0
        %647 = vmatpush1.bf16.msra.mxu0 %v628
        %648 = vmatprep.subr.bf16.mxu0 0
        %649 = vmatpush2.bf16.msra.mxu0 0
        %650 = vmatprep.subr.bf16.mxu0 0
        %651 = vmatpush2.bf16.msra.mxu0 0
        %652 = vmatprep.subr.bf16.mxu0 0
        %653 = vmatpush2.bf16.msra.mxu0 0
        %654 = vmatprep.subr.bf16.mxu0 0
        %655 = vmatpush2.bf16.msra.mxu0 0
        %656 = vmatprep.subr.bf16.mxu0 0
        %657 = vmatpush2.bf16.msra.mxu0 0
        %658 = vmatprep.subr.bf16.mxu0 0
        %659 = vmatpush2.bf16.msra.mxu0 0
        %660 = vmatprep.subr.bf16.mxu0 0
        %661 = vmatpush2.bf16.msra.mxu0 0
        %662 = vmatprep.subr.bf16.mxu0 0
        %663 = vmatpush2.bf16.msra.mxu0 0
        %664 = vmatprep.mubr.bf16.mxu0 0
        %665 = vmatmul.mubr.bf16.gmra.mxu0 %v456
        %v666 = vpop.f32.mrf.mxu0
        %v667 = vadd.f32 %v529, %v666
        %v668 = vpop.f32.mrf.mxu0
        %v669 = vpop.f32.mrf.mxu0
        %v670 = vadd.f32 %v534, %v669
        %v671 = vpop.f32.mrf.mxu0
        %672 = vmatprep.mubr.bf16.mxu0 0
        %673 = vmatmul.mubr.bf16.gmra.mxu0 %v459
        %v674 = vpop.f32.mrf.mxu0
        %v675 = vadd.f32 %v537, %v674
        %v676 = vpop.f32.mrf.mxu0
        %v677 = vpop.f32.mrf.mxu0
        %v678 = vadd.f32 %v542, %v677
        %v679 = vpop.f32.mrf.mxu0
        %680 = vmatprep.mubr.bf16.mxu0 0
        %681 = vmatmul.mubr.bf16.gmra.mxu0 %v462
        %v682 = vpop.f32.mrf.mxu0
        %v683 = vadd.f32 %v545, %v682
        %v684 = vpop.f32.mrf.mxu0
        %v685 = vpop.f32.mrf.mxu0
        %v686 = vadd.f32 %v550, %v685
        %v687 = vpop.f32.mrf.mxu0
        %688 = vmatprep.mubr.bf16.mxu0 0
        %689 = vmatmul.mubr.bf16.gmra.mxu0 %v465
        %v690 = vpop.f32.mrf.mxu0
        %v691 = vadd.f32 %v553, %v690
        %v692 = vpop.f32.mrf.mxu0
        %v693 = vpop.f32.mrf.mxu0
        %v694 = vadd.f32 %v558, %v693
        %v695 = vpop.f32.mrf.mxu0
        %696 = vmatprep.mubr.bf16.mxu0 0
        %697 = vmatmul.mubr.bf16.gmra.mxu0 %v468
        %v698 = vpop.f32.mrf.mxu0
        %v699 = vadd.f32 %v561, %v698
        %v700 = vpop.f32.mrf.mxu0
        %v701 = vpop.f32.mrf.mxu0
        %v702 = vadd.f32 %v566, %v701
        %v703 = vpop.f32.mrf.mxu0
        %704 = vmatprep.mubr.bf16.mxu0 0
        %705 = vmatmul.mubr.bf16.gmra.mxu0 %v471
        %v706 = vpop.f32.mrf.mxu0
        %v707 = vadd.f32 %v569, %v706
        %v708 = vpop.f32.mrf.mxu0
        %v709 = vpop.f32.mrf.mxu0
        %v710 = vadd.f32 %v574, %v709
        %v711 = vpop.f32.mrf.mxu0
        %712 = vmatprep.mubr.bf16.mxu0 0
        %713 = vmatmul.mubr.bf16.gmra.mxu0 %v474
        %v714 = vpop.f32.mrf.mxu0
        %v715 = vadd.f32 %v577, %v714
        %v716 = vpop.f32.mrf.mxu0
        %v717 = vpop.f32.mrf.mxu0
        %v718 = vadd.f32 %v582, %v717
        %v719 = vpop.f32.mrf.mxu0
        %720 = vmatprep.mubr.bf16.mxu0 0
        %721 = vmatmul.mubr.bf16.gmra.mxu0 %v477
        %v722 = vpop.f32.mrf.mxu0
        %v723 = vadd.f32 %v585, %v722
        %v724 = vpop.f32.mrf.mxu0
        %v725 = vpop.f32.mrf.mxu0
        %v726 = vadd.f32 %v590, %v725
        %v727 = vpop.f32.mrf.mxu0
        %728 = vmatprep.mubr.bf16.mxu0 0
        %729 = vmatmul.mubr.bf16.gmra.mxu0 %v480
        %v730 = vpop.f32.mrf.mxu0
        %v731 = vadd.f32 %v593, %v730
        %v732 = vpop.f32.mrf.mxu0
        %v733 = vpop.f32.mrf.mxu0
        %v734 = vadd.f32 %v598, %v733
        %v735 = vpop.f32.mrf.mxu0
        %736 = vmatprep.mubr.bf16.mxu0 0
        %737 = vmatmul.mubr.bf16.gmra.mxu0 %v483
        %v738 = vpop.f32.mrf.mxu0
        %v739 = vadd.f32 %v601, %v738
        %v740 = vpop.f32.mrf.mxu0
        %v741 = vpop.f32.mrf.mxu0
        %v742 = vadd.f32 %v606, %v741
        %v743 = vpop.f32.mrf.mxu0
        %744 = vmatprep.mubr.bf16.mxu0 0
        %745 = vmatmul.mubr.bf16.gmra.mxu0 %v486
        %v746 = vpop.f32.mrf.mxu0
        %v747 = vadd.f32 %v609, %v746
        %v748 = vpop.f32.mrf.mxu0
        %v749 = vpop.f32.mrf.mxu0
        %v750 = vadd.f32 %v614, %v749
        %v751 = vpop.f32.mrf.mxu0
        %752 = vmatprep.mubr.bf16.mxu0 0
        %753 = vmatmul.mubr.bf16.gmra.mxu0 %v489
        %v754 = vpop.f32.mrf.mxu0
        %v755 = vadd.f32 %v617, %v754
        %v756 = vpop.f32.mrf.mxu0
        %v757 = vpop.f32.mrf.mxu0
        %v758 = vadd.f32 %v526, %v757
        %v759 = vpop.f32.mrf.mxu0
        %760 = vdwg.mxu0
        %s761 = scalar_lea.vmem %s1, 32
        %v762 = vld [vmem:[%s761] sm:$0xf]
        %v763 = vld [vmem:[%s761 + $0x4] sm:$0xf]
        %v764 = vld [vmem:[%s761 + $0x8] sm:$0xf]
        %v765 = vld [vmem:[%s761 + $0xc] sm:$0xf]
        %v770 = vunpack.c.l.b16 %v762
        %v771 = vunpack.c.l.b16 %v763
        %v772 = vunpack.c.l.b16 %v764
        %v773 = vunpack.c.l.b16 %v765
        %v774 = vpack.c.b16 %v771, %v770
        %v775 = vpack.c.b16 %v773, %v772
        %778 = vmatprep.subr.bf16.mxu0 0
        %779 = vmatpush1.bf16.msra.mxu0 0
        %780 = vmatprep.subr.bf16.mxu0 0
        %781 = vmatpush1.bf16.msra.mxu0 0
        %782 = vmatprep.subr.bf16.mxu0 0
        %783 = vmatpush1.bf16.msra.mxu0 0
        %784 = vmatprep.subr.bf16.mxu0 0
        %785 = vmatpush1.bf16.msra.mxu0 0
        %786 = vmatprep.subr.bf16.mxu0 0
        %787 = vmatpush1.bf16.msra.mxu0 0
        %788 = vmatprep.subr.bf16.mxu0 0
        %789 = vmatpush1.bf16.msra.mxu0 0
        %790 = vmatprep.subr.bf16.mxu0 0
        %791 = vmatpush1.bf16.msra.mxu0 %v775
        %792 = vmatprep.subr.bf16.mxu0 0
        %793 = vmatpush1.bf16.msra.mxu0 %v774
        %794 = vmatprep.subr.bf16.mxu0 0
        %795 = vmatpush2.bf16.msra.mxu0 0
        %796 = vmatprep.subr.bf16.mxu0 0
        %797 = vmatpush2.bf16.msra.mxu0 0
        %798 = vmatprep.subr.bf16.mxu0 0
        %799 = vmatpush2.bf16.msra.mxu0 0
        %800 = vmatprep.subr.bf16.mxu0 0
        %801 = vmatpush2.bf16.msra.mxu0 0
        %802 = vmatprep.subr.bf16.mxu0 0
        %803 = vmatpush2.bf16.msra.mxu0 0
        %804 = vmatprep.subr.bf16.mxu0 0
        %805 = vmatpush2.bf16.msra.mxu0 0
        %806 = vmatprep.subr.bf16.mxu0 0
        %807 = vmatpush2.bf16.msra.mxu0 0
        %808 = vmatprep.subr.bf16.mxu0 0
        %809 = vmatpush2.bf16.msra.mxu0 0
        %810 = vmatprep.mubr.bf16.mxu0 0
        %811 = vmatmul.mubr.bf16.gmra.mxu0 %v456
        %v812 = vpop.f32.mrf.mxu0
        %v813 = vadd.f32 0.0, %v812
        %v814 = vpop.f32.mrf.mxu0
        %v815 = vpop.f32.mrf.mxu0
        %v816 = vadd.f32 0.0, %v815
        %v817 = vpop.f32.mrf.mxu0
        %818 = vmatprep.mubr.bf16.mxu0 0
        %819 = vmatmul.mubr.bf16.gmra.mxu0 %v459
        %v820 = vpop.f32.mrf.mxu0
        %v821 = vadd.f32 0.0, %v820
        %v822 = vpop.f32.mrf.mxu0
        %v823 = vpop.f32.mrf.mxu0
        %v824 = vadd.f32 0.0, %v823
        %v825 = vpop.f32.mrf.mxu0
        %826 = vmatprep.mubr.bf16.mxu0 0
        %827 = vmatmul.mubr.bf16.gmra.mxu0 %v462
        %v828 = vpop.f32.mrf.mxu0
        %v829 = vadd.f32 0.0, %v828
        %v830 = vpop.f32.mrf.mxu0
        %v831 = vpop.f32.mrf.mxu0
        %v832 = vadd.f32 0.0, %v831
        %v833 = vpop.f32.mrf.mxu0
        %834 = vmatprep.mubr.bf16.mxu0 0
        %835 = vmatmul.mubr.bf16.gmra.mxu0 %v465
        %v836 = vpop.f32.mrf.mxu0
        %v837 = vadd.f32 0.0, %v836
        %v838 = vpop.f32.mrf.mxu0
        %v839 = vpop.f32.mrf.mxu0
        %v840 = vadd.f32 0.0, %v839
        %v841 = vpop.f32.mrf.mxu0
        %842 = vmatprep.mubr.bf16.mxu0 0
        %843 = vmatmul.mubr.bf16.gmra.mxu0 %v468
        %v844 = vpop.f32.mrf.mxu0
        %v845 = vadd.f32 0.0, %v844
        %v846 = vpop.f32.mrf.mxu0
        %v847 = vpop.f32.mrf.mxu0
        %v848 = vadd.f32 0.0, %v847
        %v849 = vpop.f32.mrf.mxu0
        %850 = vmatprep.mubr.bf16.mxu0 0
        %851 = vmatmul.mubr.bf16.gmra.mxu0 %v471
        %v852 = vpop.f32.mrf.mxu0
        %v853 = vadd.f32 0.0, %v852
        %v854 = vpop.f32.mrf.mxu0
        %v855 = vpop.f32.mrf.mxu0
        %v856 = vadd.f32 0.0, %v855
        %v857 = vpop.f32.mrf.mxu0
        %858 = vmatprep.mubr.bf16.mxu0 0
        %859 = vmatmul.mubr.bf16.gmra.mxu0 %v474
        %v860 = vpop.f32.mrf.mxu0
        %v861 = vadd.f32 0.0, %v860
        %v862 = vpop.f32.mrf.mxu0
        %v863 = vpop.f32.mrf.mxu0
        %v864 = vadd.f32 0.0, %v863
        %v865 = vpop.f32.mrf.mxu0
        %866 = vmatprep.mubr.bf16.mxu0 0
        %867 = vmatmul.mubr.bf16.gmra.mxu0 %v477
        %v868 = vpop.f32.mrf.mxu0
        %v869 = vadd.f32 0.0, %v868
        %v870 = vpop.f32.mrf.mxu0
        %v871 = vpop.f32.mrf.mxu0
        %v872 = vadd.f32 0.0, %v871
        %v873 = vpop.f32.mrf.mxu0
        %874 = vmatprep.mubr.bf16.mxu0 0
        %875 = vmatmul.mubr.bf16.gmra.mxu0 %v480
        %v876 = vpop.f32.mrf.mxu0
        %v877 = vadd.f32 0.0, %v876
        %v878 = vpop.f32.mrf.mxu0
        %v879 = vpop.f32.mrf.mxu0
        %v880 = vadd.f32 0.0, %v879
        %v881 = vpop.f32.mrf.mxu0
        %882 = vmatprep.mubr.bf16.mxu0 0
        %883 = vmatmul.mubr.bf16.gmra.mxu0 %v483
        %v884 = vpop.f32.mrf.mxu0
        %v885 = vadd.f32 0.0, %v884
        %v886 = vpop.f32.mrf.mxu0
        %v887 = vpop.f32.mrf.mxu0
        %v888 = vadd.f32 0.0, %v887
        %v889 = vpop.f32.mrf.mxu0
        %890 = vmatprep.mubr.bf16.mxu0 0
        %891 = vmatmul.mubr.bf16.gmra.mxu0 %v486
        %v892 = vpop.f32.mrf.mxu0
        %v893 = vadd.f32 0.0, %v892
        %v894 = vpop.f32.mrf.mxu0
        %v895 = vpop.f32.mrf.mxu0
        %v896 = vadd.f32 0.0, %v895
        %v897 = vpop.f32.mrf.mxu0
        %898 = vmatprep.mubr.bf16.mxu0 0
        %899 = vmatmul.mubr.bf16.gmra.mxu0 %v489
        %v900 = vpop.f32.mrf.mxu0
        %v901 = vadd.f32 0.0, %v900
        %v902 = vpop.f32.mrf.mxu0
        %v903 = vpop.f32.mrf.mxu0
        %v904 = vadd.f32 0.0, %v903
        %v905 = vpop.f32.mrf.mxu0
        %906 = vdwg.mxu0
        %v907 = vadd.f32 %v667, %v821
        %v908 = vadd.f32 %v670, %v824
        %v909 = vadd.f32 %v675, %v829
        %v910 = vadd.f32 %v678, %v832
        %v911 = vadd.f32 %v683, %v837
        %v912 = vadd.f32 %v686, %v840
        %v913 = vadd.f32 %v691, %v845
        %v914 = vadd.f32 %v694, %v848
        %v915 = vadd.f32 %v699, %v853
        %v916 = vadd.f32 %v702, %v856
        %v917 = vadd.f32 %v707, %v861
        %v918 = vadd.f32 %v710, %v864
        %v919 = vadd.f32 %v715, %v869
        %v920 = vadd.f32 %v718, %v872
        %v921 = vadd.f32 %v723, %v877
        %v922 = vadd.f32 %v726, %v880
        %v923 = vadd.f32 %v731, %v885
        %v924 = vadd.f32 %v734, %v888
        %v925 = vadd.f32 %v739, %v893
        %v926 = vadd.f32 %v742, %v896
        %v927 = vadd.f32 %v747, %v901
        %v928 = vadd.f32 %v750, %v904
        %v929 = vadd.f32 %v755, %v813
        %v930 = vadd.f32 %v758, %v816
        %s931 = scalar_lea.vmem %s1, 48
        %v932 = vld [vmem:[%s931] sm:$0xf]
        %v933 = vld [vmem:[%s931 + $0x4] sm:$0xf]
        %v934 = vld [vmem:[%s931 + $0x8] sm:$0xf]
        %v935 = vld [vmem:[%s931 + $0xc] sm:$0xf]
        %v940 = vunpack.c.l.b16 %v932
        %v941 = vunpack.c.l.b16 %v933
        %v942 = vunpack.c.l.b16 %v934
        %v943 = vunpack.c.l.b16 %v935
        %v944 = vpack.c.b16 %v941, %v940
        %v945 = vpack.c.b16 %v943, %v942
        %948 = vmatprep.subr.bf16.mxu0 0
        %949 = vmatpush1.bf16.msra.mxu0 0
        %950 = vmatprep.subr.bf16.mxu0 0
        %951 = vmatpush1.bf16.msra.mxu0 0
        %952 = vmatprep.subr.bf16.mxu0 0
        %953 = vmatpush1.bf16.msra.mxu0 0
        %954 = vmatprep.subr.bf16.mxu0 0
        %955 = vmatpush1.bf16.msra.mxu0 0
        %956 = vmatprep.subr.bf16.mxu0 0
        %957 = vmatpush1.bf16.msra.mxu0 0
        %958 = vmatprep.subr.bf16.mxu0 0
        %959 = vmatpush1.bf16.msra.mxu0 0
        %960 = vmatprep.subr.bf16.mxu0 0
        %961 = vmatpush1.bf16.msra.mxu0 %v945
        %962 = vmatprep.subr.bf16.mxu0 0
        %963 = vmatpush1.bf16.msra.mxu0 %v944
        %964 = vmatprep.subr.bf16.mxu0 0
        %965 = vmatpush2.bf16.msra.mxu0 0
        %966 = vmatprep.subr.bf16.mxu0 0
        %967 = vmatpush2.bf16.msra.mxu0 0
        %968 = vmatprep.subr.bf16.mxu0 0
        %969 = vmatpush2.bf16.msra.mxu0 0
        %970 = vmatprep.subr.bf16.mxu0 0
        %971 = vmatpush2.bf16.msra.mxu0 0
        %972 = vmatprep.subr.bf16.mxu0 0
        %973 = vmatpush2.bf16.msra.mxu0 0
        %974 = vmatprep.subr.bf16.mxu0 0
        %975 = vmatpush2.bf16.msra.mxu0 0
        %976 = vmatprep.subr.bf16.mxu0 0
        %977 = vmatpush2.bf16.msra.mxu0 0
        %978 = vmatprep.subr.bf16.mxu0 0
        %979 = vmatpush2.bf16.msra.mxu0 0
        %980 = vmatprep.mubr.bf16.mxu0 0
        %981 = vmatmul.mubr.bf16.gmra.mxu0 %v456
        %v982 = vpop.f32.mrf.mxu0
        %v983 = vadd.f32 0.0, %v982
        %v984 = vpop.f32.mrf.mxu0
        %v985 = vpop.f32.mrf.mxu0
        %v986 = vadd.f32 0.0, %v985
        %v987 = vpop.f32.mrf.mxu0
        %988 = vmatprep.mubr.bf16.mxu0 0
        %989 = vmatmul.mubr.bf16.gmra.mxu0 %v459
        %v990 = vpop.f32.mrf.mxu0
        %v991 = vadd.f32 0.0, %v990
        %v992 = vpop.f32.mrf.mxu0
        %v993 = vpop.f32.mrf.mxu0
        %v994 = vadd.f32 0.0, %v993
        %v995 = vpop.f32.mrf.mxu0
        %996 = vmatprep.mubr.bf16.mxu0 0
        %997 = vmatmul.mubr.bf16.gmra.mxu0 %v462
        %v998 = vpop.f32.mrf.mxu0
        %v999 = vadd.f32 0.0, %v998
        %v1000 = vpop.f32.mrf.mxu0
        %v1001 = vpop.f32.mrf.mxu0
        %v1002 = vadd.f32 0.0, %v1001
        %v1003 = vpop.f32.mrf.mxu0
        %1004 = vmatprep.mubr.bf16.mxu0 0
        %1005 = vmatmul.mubr.bf16.gmra.mxu0 %v465
        %v1006 = vpop.f32.mrf.mxu0
        %v1007 = vadd.f32 0.0, %v1006
        %v1008 = vpop.f32.mrf.mxu0
        %v1009 = vpop.f32.mrf.mxu0
        %v1010 = vadd.f32 0.0, %v1009
        %v1011 = vpop.f32.mrf.mxu0
        %1012 = vmatprep.mubr.bf16.mxu0 0
        %1013 = vmatmul.mubr.bf16.gmra.mxu0 %v468
        %v1014 = vpop.f32.mrf.mxu0
        %v1015 = vadd.f32 0.0, %v1014
        %v1016 = vpop.f32.mrf.mxu0
        %v1017 = vpop.f32.mrf.mxu0
        %v1018 = vadd.f32 0.0, %v1017
        %v1019 = vpop.f32.mrf.mxu0
        %1020 = vmatprep.mubr.bf16.mxu0 0
        %1021 = vmatmul.mubr.bf16.gmra.mxu0 %v471
        %v1022 = vpop.f32.mrf.mxu0
        %v1023 = vadd.f32 0.0, %v1022
        %v1024 = vpop.f32.mrf.mxu0
        %v1025 = vpop.f32.mrf.mxu0
        %v1026 = vadd.f32 0.0, %v1025
        %v1027 = vpop.f32.mrf.mxu0
        %1028 = vmatprep.mubr.bf16.mxu0 0
        %1029 = vmatmul.mubr.bf16.gmra.mxu0 %v474
        %v1030 = vpop.f32.mrf.mxu0
        %v1031 = vadd.f32 0.0, %v1030
        %v1032 = vpop.f32.mrf.mxu0
        %v1033 = vpop.f32.mrf.mxu0
        %v1034 = vadd.f32 0.0, %v1033
        %v1035 = vpop.f32.mrf.mxu0
        %1036 = vmatprep.mubr.bf16.mxu0 0
        %1037 = vmatmul.mubr.bf16.gmra.mxu0 %v477
        %v1038 = vpop.f32.mrf.mxu0
        %v1039 = vadd.f32 0.0, %v1038
        %v1040 = vpop.f32.mrf.mxu0
        %v1041 = vpop.f32.mrf.mxu0
        %v1042 = vadd.f32 0.0, %v1041
        %v1043 = vpop.f32.mrf.mxu0
        %1044 = vmatprep.mubr.bf16.mxu0 0
        %1045 = vmatmul.mubr.bf16.gmra.mxu0 %v480
        %v1046 = vpop.f32.mrf.mxu0
        %v1047 = vadd.f32 0.0, %v1046
        %v1048 = vpop.f32.mrf.mxu0
        %v1049 = vpop.f32.mrf.mxu0
        %v1050 = vadd.f32 0.0, %v1049
        %v1051 = vpop.f32.mrf.mxu0
        %1052 = vmatprep.mubr.bf16.mxu0 0
        %1053 = vmatmul.mubr.bf16.gmra.mxu0 %v483
        %v1054 = vpop.f32.mrf.mxu0
        %v1055 = vadd.f32 0.0, %v1054
        %v1056 = vpop.f32.mrf.mxu0
        %v1057 = vpop.f32.mrf.mxu0
        %v1058 = vadd.f32 0.0, %v1057
        %v1059 = vpop.f32.mrf.mxu0
        %1060 = vmatprep.mubr.bf16.mxu0 0
        %1061 = vmatmul.mubr.bf16.gmra.mxu0 %v486
        %v1062 = vpop.f32.mrf.mxu0
        %v1063 = vadd.f32 0.0, %v1062
        %v1064 = vpop.f32.mrf.mxu0
        %v1065 = vpop.f32.mrf.mxu0
        %v1066 = vadd.f32 0.0, %v1065
        %v1067 = vpop.f32.mrf.mxu0
        %1068 = vmatprep.mubr.bf16.mxu0 0
        %1069 = vmatmul.mubr.bf16.gmra.mxu0 %v489
        %v1070 = vpop.f32.mrf.mxu0
        %v1071 = vadd.f32 0.0, %v1070
        %v1072 = vpop.f32.mrf.mxu0
        %v1073 = vpop.f32.mrf.mxu0
        %v1074 = vadd.f32 0.0, %v1073
        %v1075 = vpop.f32.mrf.mxu0
        %1076 = vdwg.mxu0
        %v1077 = vadd.f32 %v907, %v994
        %v1078 = vadd.f32 %v908, %v999
        %v1079 = vadd.f32 %v909, %v1002
        %v1080 = vadd.f32 %v910, %v1007
        %v1081 = vadd.f32 %v911, %v1010
        %v1082 = vadd.f32 %v912, %v1015
        %v1083 = vadd.f32 %v913, %v1018
        %v1084 = vadd.f32 %v914, %v1023
        %v1085 = vadd.f32 %v915, %v1026
        %v1086 = vadd.f32 %v916, %v1031
        %v1087 = vadd.f32 %v917, %v1034
        %v1088 = vadd.f32 %v918, %v1039
        %v1089 = vadd.f32 %v919, %v1042
        %v1090 = vadd.f32 %v920, %v1047
        %v1091 = vadd.f32 %v921, %v1050
        %v1092 = vadd.f32 %v922, %v1055
        %v1093 = vadd.f32 %v923, %v1058
        %v1094 = vadd.f32 %v924, %v1063
        %v1095 = vadd.f32 %v925, %v1066
        %v1096 = vadd.f32 %v926, %v1071
        %v1097 = vadd.f32 %v927, %v1074
        %v1098 = vadd.f32 %v928, %v983
        %v1099 = vadd.f32 %v929, %v986
        %v1100 = vadd.f32 %v930, %v991
        %s1101 = scalar_lea.vmem %s1, 64
        %v1102 = vld [vmem:[%s1101] sm:$0xf]
        %v1103 = vld [vmem:[%s1101 + $0x4] sm:$0xf]
        %v1104 = vld [vmem:[%s1101 + $0x8] sm:$0xf]
        %v1105 = vld [vmem:[%s1101 + $0xc] sm:$0xf]
        %v1110 = vunpack.c.l.b16 %v1102
        %v1111 = vunpack.c.l.b16 %v1103
        %v1112 = vunpack.c.l.b16 %v1104
        %v1113 = vunpack.c.l.b16 %v1105
        %v1114 = vpack.c.b16 %v1111, %v1110
        %v1115 = vpack.c.b16 %v1113, %v1112
        %1118 = vmatprep.subr.bf16.mxu0 0
        %1119 = vmatpush1.bf16.msra.mxu0 0
        %1120 = vmatprep.subr.bf16.mxu0 0
        %1121 = vmatpush1.bf16.msra.mxu0 0
        %1122 = vmatprep.subr.bf16.mxu0 0
        %1123 = vmatpush1.bf16.msra.mxu0 0
        %1124 = vmatprep.subr.bf16.mxu0 0
        %1125 = vmatpush1.bf16.msra.mxu0 0
        %1126 = vmatprep.subr.bf16.mxu0 0
        %1127 = vmatpush1.bf16.msra.mxu0 0
        %1128 = vmatprep.subr.bf16.mxu0 0
        %1129 = vmatpush1.bf16.msra.mxu0 0
        %1130 = vmatprep.subr.bf16.mxu0 0
        %1131 = vmatpush1.bf16.msra.mxu0 %v1115
        %1132 = vmatprep.subr.bf16.mxu0 0
        %1133 = vmatpush1.bf16.msra.mxu0 %v1114
        %1134 = vmatprep.subr.bf16.mxu0 0
        %1135 = vmatpush2.bf16.msra.mxu0 0
        %1136 = vmatprep.subr.bf16.mxu0 0
        %1137 = vmatpush2.bf16.msra.mxu0 0
        %1138 = vmatprep.subr.bf16.mxu0 0
        %1139 = vmatpush2.bf16.msra.mxu0 0
        %1140 = vmatprep.subr.bf16.mxu0 0
        %1141 = vmatpush2.bf16.msra.mxu0 0
        %1142 = vmatprep.subr.bf16.mxu0 0
        %1143 = vmatpush2.bf16.msra.mxu0 0
        %1144 = vmatprep.subr.bf16.mxu0 0
        %1145 = vmatpush2.bf16.msra.mxu0 0
        %1146 = vmatprep.subr.bf16.mxu0 0
        %1147 = vmatpush2.bf16.msra.mxu0 0
        %1148 = vmatprep.subr.bf16.mxu0 0
        %1149 = vmatpush2.bf16.msra.mxu0 0
        %1150 = vmatprep.mubr.bf16.mxu0 0
        %1151 = vmatmul.mubr.bf16.gmra.mxu0 %v456
        %v1152 = vpop.f32.mrf.mxu0
        %v1153 = vadd.f32 0.0, %v1152
        %v1154 = vpop.f32.mrf.mxu0
        %v1155 = vpop.f32.mrf.mxu0
        %v1156 = vadd.f32 0.0, %v1155
        %v1157 = vpop.f32.mrf.mxu0
        %1158 = vmatprep.mubr.bf16.mxu0 0
        %1159 = vmatmul.mubr.bf16.gmra.mxu0 %v459
        %v1160 = vpop.f32.mrf.mxu0
        %v1161 = vadd.f32 0.0, %v1160
        %v1162 = vpop.f32.mrf.mxu0
        %v1163 = vpop.f32.mrf.mxu0
        %v1164 = vadd.f32 0.0, %v1163
        %v1165 = vpop.f32.mrf.mxu0
        %1166 = vmatprep.mubr.bf16.mxu0 0
        %1167 = vmatmul.mubr.bf16.gmra.mxu0 %v462
        %v1168 = vpop.f32.mrf.mxu0
        %v1169 = vadd.f32 0.0, %v1168
        %v1170 = vpop.f32.mrf.mxu0
        %v1171 = vpop.f32.mrf.mxu0
        %v1172 = vadd.f32 0.0, %v1171
        %v1173 = vpop.f32.mrf.mxu0
        %1174 = vmatprep.mubr.bf16.mxu0 0
        %1175 = vmatmul.mubr.bf16.gmra.mxu0 %v465
        %v1176 = vpop.f32.mrf.mxu0
        %v1177 = vadd.f32 0.0, %v1176
        %v1178 = vpop.f32.mrf.mxu0
        %v1179 = vpop.f32.mrf.mxu0
        %v1180 = vadd.f32 0.0, %v1179
        %v1181 = vpop.f32.mrf.mxu0
        %1182 = vmatprep.mubr.bf16.mxu0 0
        %1183 = vmatmul.mubr.bf16.gmra.mxu0 %v468
        %v1184 = vpop.f32.mrf.mxu0
        %v1185 = vadd.f32 0.0, %v1184
        %v1186 = vpop.f32.mrf.mxu0
        %v1187 = vpop.f32.mrf.mxu0
        %v1188 = vadd.f32 0.0, %v1187
        %v1189 = vpop.f32.mrf.mxu0
        %1190 = vmatprep.mubr.bf16.mxu0 0
        %1191 = vmatmul.mubr.bf16.gmra.mxu0 %v471
        %v1192 = vpop.f32.mrf.mxu0
        %v1193 = vadd.f32 0.0, %v1192
        %v1194 = vpop.f32.mrf.mxu0
        %v1195 = vpop.f32.mrf.mxu0
        %v1196 = vadd.f32 0.0, %v1195
        %v1197 = vpop.f32.mrf.mxu0
        %1198 = vmatprep.mubr.bf16.mxu0 0
        %1199 = vmatmul.mubr.bf16.gmra.mxu0 %v474
        %v1200 = vpop.f32.mrf.mxu0
        %v1201 = vadd.f32 0.0, %v1200
        %v1202 = vpop.f32.mrf.mxu0
        %v1203 = vpop.f32.mrf.mxu0
        %v1204 = vadd.f32 0.0, %v1203
        %v1205 = vpop.f32.mrf.mxu0
        %1206 = vmatprep.mubr.bf16.mxu0 0
        %1207 = vmatmul.mubr.bf16.gmra.mxu0 %v477
        %v1208 = vpop.f32.mrf.mxu0
        %v1209 = vadd.f32 0.0, %v1208
        %v1210 = vpop.f32.mrf.mxu0
        %v1211 = vpop.f32.mrf.mxu0
        %v1212 = vadd.f32 0.0, %v1211
        %v1213 = vpop.f32.mrf.mxu0
        %1214 = vmatprep.mubr.bf16.mxu0 0
        %1215 = vmatmul.mubr.bf16.gmra.mxu0 %v480
        %v1216 = vpop.f32.mrf.mxu0
        %v1217 = vadd.f32 0.0, %v1216
        %v1218 = vpop.f32.mrf.mxu0
        %v1219 = vpop.f32.mrf.mxu0
        %v1220 = vadd.f32 0.0, %v1219
        %v1221 = vpop.f32.mrf.mxu0
        %1222 = vmatprep.mubr.bf16.mxu0 0
        %1223 = vmatmul.mubr.bf16.gmra.mxu0 %v483
        %v1224 = vpop.f32.mrf.mxu0
        %v1225 = vadd.f32 0.0, %v1224
        %v1226 = vpop.f32.mrf.mxu0
        %v1227 = vpop.f32.mrf.mxu0
        %v1228 = vadd.f32 0.0, %v1227
        %v1229 = vpop.f32.mrf.mxu0
        %1230 = vmatprep.mubr.bf16.mxu0 0
        %1231 = vmatmul.mubr.bf16.gmra.mxu0 %v486
        %v1232 = vpop.f32.mrf.mxu0
        %v1233 = vadd.f32 0.0, %v1232
        %v1234 = vpop.f32.mrf.mxu0
        %v1235 = vpop.f32.mrf.mxu0
        %v1236 = vadd.f32 0.0, %v1235
        %v1237 = vpop.f32.mrf.mxu0
        %1238 = vmatprep.mubr.bf16.mxu0 0
        %1239 = vmatmul.mubr.bf16.gmra.mxu0 %v489
        %v1240 = vpop.f32.mrf.mxu0
        %v1241 = vadd.f32 0.0, %v1240
        %v1242 = vpop.f32.mrf.mxu0
        %v1243 = vpop.f32.mrf.mxu0
        %v1244 = vadd.f32 0.0, %v1243
        %v1245 = vpop.f32.mrf.mxu0
        %1246 = vdwg.mxu0
        %v1247 = vadd.f32 %v1077, %v1169
        %v1248 = vadd.f32 %v1078, %v1172
        %v1249 = vadd.f32 %v1079, %v1177
        %v1250 = vadd.f32 %v1080, %v1180
        %v1251 = vadd.f32 %v1081, %v1185
        %v1252 = vadd.f32 %v1082, %v1188
        %v1253 = vadd.f32 %v1083, %v1193
        %v1254 = vadd.f32 %v1084, %v1196
        %v1255 = vadd.f32 %v1085, %v1201
        %v1256 = vadd.f32 %v1086, %v1204
        %v1257 = vadd.f32 %v1087, %v1209
        %v1258 = vadd.f32 %v1088, %v1212
        %v1259 = vadd.f32 %v1089, %v1217
        %v1260 = vadd.f32 %v1090, %v1220
        %v1261 = vadd.f32 %v1091, %v1225
        %v1262 = vadd.f32 %v1092, %v1228
        %v1263 = vadd.f32 %v1093, %v1233
        %v1264 = vadd.f32 %v1094, %v1236
        %v1265 = vadd.f32 %v1095, %v1241
        %v1266 = vadd.f32 %v1096, %v1244
        %v1267 = vadd.f32 %v1097, %v1153
        %v1268 = vadd.f32 %v1098, %v1156
        %v1269 = vadd.f32 %v1099, %v1161
        %v1270 = vadd.f32 %v1100, %v1164
        %v1271 = vld [vmem:[%s2] sm:$0x1]
        %v1273 = vlaneseq
        %v1274 = vshrl.u32 %v1273, 7
        %v1275 = vsub.s32 0, %v1274
        %v1276 = vrot.slane %v1271, %v1275
        %v1278 = vadd.f32 %v1247, %v1276
        %v1279 = vadd.f32 %v1248, %v1276
        %v1280 = vadd.f32 %v1249, %v1276
        %v1281 = vadd.f32 %v1250, %v1276
        %v1282 = vadd.f32 %v1251, %v1276
        %v1283 = vadd.f32 %v1252, %v1276
        %v1284 = vadd.f32 %v1253, %v1276
        %v1285 = vadd.f32 %v1254, %v1276
        %v1286 = vadd.f32 %v1255, %v1276
        %v1287 = vadd.f32 %v1256, %v1276
        %v1288 = vadd.f32 %v1257, %v1276
        %v1289 = vadd.f32 %v1258, %v1276
        %v1290 = vadd.f32 %v1259, %v1276
        %v1291 = vadd.f32 %v1260, %v1276
        %v1292 = vadd.f32 %v1261, %v1276
        %v1293 = vadd.f32 %v1262, %v1276
        %v1294 = vadd.f32 %v1263, %v1276
        %v1295 = vadd.f32 %v1264, %v1276
        %v1296 = vadd.f32 %v1265, %v1276
        %v1297 = vadd.f32 %v1266, %v1276
        %v1298 = vadd.f32 %v1267, %v1276
        %v1299 = vadd.f32 %v1268, %v1276
        %v1300 = vadd.f32 %v1269, %v1276
        %v1301 = vadd.f32 %v1270, %v1276
        %v1302 = vmax.f32 %v1278, 0.0
        %v1303 = vmax.f32 %v1279, 0.0
        %v1304 = vmax.f32 %v1280, 0.0
        %v1305 = vmax.f32 %v1281, 0.0
        %v1306 = vmax.f32 %v1282, 0.0
        %v1307 = vmax.f32 %v1283, 0.0
        %v1308 = vmax.f32 %v1284, 0.0
        %v1309 = vmax.f32 %v1285, 0.0
        %v1310 = vmax.f32 %v1286, 0.0
        %v1311 = vmax.f32 %v1287, 0.0
        %v1312 = vmax.f32 %v1288, 0.0
        %v1313 = vmax.f32 %v1289, 0.0
        %v1314 = vmax.f32 %v1290, 0.0
        %v1315 = vmax.f32 %v1291, 0.0
        %v1316 = vmax.f32 %v1292, 0.0
        %v1317 = vmax.f32 %v1293, 0.0
        %v1318 = vmax.f32 %v1294, 0.0
        %v1319 = vmax.f32 %v1295, 0.0
        %v1320 = vmax.f32 %v1296, 0.0
        %v1321 = vmax.f32 %v1297, 0.0
        %v1322 = vmax.f32 %v1298, 0.0
        %v1323 = vmax.f32 %v1299, 0.0
        %v1324 = vmax.f32 %v1300, 0.0
        %v1325 = vmax.f32 %v1301, 0.0
        %v1326 = vpack.c.bf16 %v1303, %v1302
        %v1327 = vpack.c.bf16 %v1305, %v1304
        %v1328 = vpack.c.bf16 %v1307, %v1306
        %v1329 = vpack.c.bf16 %v1309, %v1308
        %v1330 = vpack.c.bf16 %v1311, %v1310
        %v1331 = vpack.c.bf16 %v1313, %v1312
        %v1332 = vpack.c.bf16 %v1315, %v1314
        %v1333 = vpack.c.bf16 %v1317, %v1316
        %v1334 = vpack.c.bf16 %v1319, %v1318
        %v1335 = vpack.c.bf16 %v1321, %v1320
        %v1336 = vpack.c.bf16 %v1323, %v1322
        %v1337 = vpack.c.bf16 %v1325, %v1324
        %v1338 = vld [vmem:[%s3] sm:$0xf]
        %v1339 = vld [vmem:[%s3 + $0x4] sm:$0xf]
        %v1340 = vld [vmem:[%s3 + $0x8] sm:$0xf]
        %v1341 = vld [vmem:[%s3 + $0xc] sm:$0xf]
        %s1342 = scalar_lea.vmem %s3, 16
        %v1343 = vld [vmem:[%s1342] sm:$0xf]
        %v1344 = vld [vmem:[%s1342 + $0x4] sm:$0xf]
        %v1345 = vld [vmem:[%s1342 + $0x8] sm:$0xf]
        %v1346 = vld [vmem:[%s1342 + $0xc] sm:$0xf]
        %v1351 = vunpack.c.l.b16 %v1343
        %v1352 = vunpack.c.l.b16 %v1344
        %v1353 = vunpack.c.l.b16 %v1345
        %v1354 = vunpack.c.l.b16 %v1346
        %v1355 = vpack.c.b16 %v1352, %v1351
        %v1356 = vpack.c.b16 %v1354, %v1353
        %v1360 = vsel %vm454, %v1326, 0
        %v1363 = vsel %vm454, %v1327, 0
        %v1366 = vsel %vm454, %v1328, 0
        %v1369 = vsel %vm454, %v1329, 0
        %v1372 = vsel %vm454, %v1330, 0
        %v1375 = vsel %vm454, %v1331, 0
        %v1378 = vsel %vm454, %v1332, 0
        %v1381 = vsel %vm454, %v1333, 0
        %v1384 = vsel %vm454, %v1334, 0
        %v1387 = vsel %vm454, %v1335, 0
        %v1390 = vsel %vm454, %v1336, 0
        %v1393 = vsel %vm454, %v1337, 0
        %1395 = vmatprep.subr.bf16.mxu0 0
        %1396 = vmatpush1.bf16.msra.mxu0 0
        %1397 = vmatprep.subr.bf16.mxu0 0
        %1398 = vmatpush1.bf16.msra.mxu0 0
        %1399 = vmatprep.subr.bf16.mxu0 0
        %1400 = vmatpush1.bf16.msra.mxu0 0
        %1401 = vmatprep.subr.bf16.mxu0 0
        %1402 = vmatpush1.bf16.msra.mxu0 0
        %1403 = vmatprep.subr.bf16.mxu0 0
        %1404 = vmatpush1.bf16.msra.mxu0 0
        %1405 = vmatprep.subr.bf16.mxu0 0
        %1406 = vmatpush1.bf16.msra.mxu0 0
        %1407 = vmatprep.subr.bf16.mxu0 0
        %1408 = vmatpush1.bf16.msra.mxu0 %v1356
        %1409 = vmatprep.subr.bf16.mxu0 0
        %1410 = vmatpush1.bf16.msra.mxu0 %v1355
        %1411 = vmatprep.subr.bf16.mxu0 0
        %1412 = vmatpush2.bf16.msra.mxu0 0
        %1413 = vmatprep.subr.bf16.mxu0 0
        %1414 = vmatpush2.bf16.msra.mxu0 0
        %1415 = vmatprep.subr.bf16.mxu0 0
        %1416 = vmatpush2.bf16.msra.mxu0 0
        %1417 = vmatprep.subr.bf16.mxu0 0
        %1418 = vmatpush2.bf16.msra.mxu0 0
        %1419 = vmatprep.subr.bf16.mxu0 0
        %1420 = vmatpush2.bf16.msra.mxu0 0
        %1421 = vmatprep.subr.bf16.mxu0 0
        %1422 = vmatpush2.bf16.msra.mxu0 0
        %1423 = vmatprep.subr.bf16.mxu0 0
        %1424 = vmatpush2.bf16.msra.mxu0 0
        %1425 = vmatprep.subr.bf16.mxu0 0
        %1426 = vmatpush2.bf16.msra.mxu0 0
        %1427 = vmatprep.mubr.bf16.mxu0 0
        %1428 = vmatmul.mubr.bf16.gmra.mxu0 %v1360
        %v1429 = vpop.f32.mrf.mxu0
        %v1430 = vadd.f32 0.0, %v1429
        %v1431 = vpop.f32.mrf.mxu0
        %v1432 = vpop.f32.mrf.mxu0
        %v1433 = vadd.f32 0.0, %v1432
        %v1434 = vpop.f32.mrf.mxu0
        %1435 = vmatprep.mubr.bf16.mxu0 0
        %1436 = vmatmul.mubr.bf16.gmra.mxu0 %v1363
        %v1437 = vpop.f32.mrf.mxu0
        %v1438 = vadd.f32 0.0, %v1437
        %v1439 = vpop.f32.mrf.mxu0
        %v1440 = vpop.f32.mrf.mxu0
        %v1441 = vadd.f32 0.0, %v1440
        %v1442 = vpop.f32.mrf.mxu0
        %1443 = vmatprep.mubr.bf16.mxu0 0
        %1444 = vmatmul.mubr.bf16.gmra.mxu0 %v1366
        %v1445 = vpop.f32.mrf.mxu0
        %v1446 = vadd.f32 0.0, %v1445
        %v1447 = vpop.f32.mrf.mxu0
        %v1448 = vpop.f32.mrf.mxu0
        %v1449 = vadd.f32 0.0, %v1448
        %v1450 = vpop.f32.mrf.mxu0
        %1451 = vmatprep.mubr.bf16.mxu0 0
        %1452 = vmatmul.mubr.bf16.gmra.mxu0 %v1369
        %v1453 = vpop.f32.mrf.mxu0
        %v1454 = vadd.f32 0.0, %v1453
        %v1455 = vpop.f32.mrf.mxu0
        %v1456 = vpop.f32.mrf.mxu0
        %v1457 = vadd.f32 0.0, %v1456
        %v1458 = vpop.f32.mrf.mxu0
        %1459 = vmatprep.mubr.bf16.mxu0 0
        %1460 = vmatmul.mubr.bf16.gmra.mxu0 %v1372
        %v1461 = vpop.f32.mrf.mxu0
        %v1462 = vadd.f32 0.0, %v1461
        %v1463 = vpop.f32.mrf.mxu0
        %v1464 = vpop.f32.mrf.mxu0
        %v1465 = vadd.f32 0.0, %v1464
        %v1466 = vpop.f32.mrf.mxu0
        %1467 = vmatprep.mubr.bf16.mxu0 0
        %1468 = vmatmul.mubr.bf16.gmra.mxu0 %v1375
        %v1469 = vpop.f32.mrf.mxu0
        %v1470 = vadd.f32 0.0, %v1469
        %v1471 = vpop.f32.mrf.mxu0
        %v1472 = vpop.f32.mrf.mxu0
        %v1473 = vadd.f32 0.0, %v1472
        %v1474 = vpop.f32.mrf.mxu0
        %1475 = vmatprep.mubr.bf16.mxu0 0
        %1476 = vmatmul.mubr.bf16.gmra.mxu0 %v1378
        %v1477 = vpop.f32.mrf.mxu0
        %v1478 = vadd.f32 0.0, %v1477
        %v1479 = vpop.f32.mrf.mxu0
        %v1480 = vpop.f32.mrf.mxu0
        %v1481 = vadd.f32 0.0, %v1480
        %v1482 = vpop.f32.mrf.mxu0
        %1483 = vmatprep.mubr.bf16.mxu0 0
        %1484 = vmatmul.mubr.bf16.gmra.mxu0 %v1381
        %v1485 = vpop.f32.mrf.mxu0
        %v1486 = vadd.f32 0.0, %v1485
        %v1487 = vpop.f32.mrf.mxu0
        %v1488 = vpop.f32.mrf.mxu0
        %v1489 = vadd.f32 0.0, %v1488
        %v1490 = vpop.f32.mrf.mxu0
        %1491 = vmatprep.mubr.bf16.mxu0 0
        %1492 = vmatmul.mubr.bf16.gmra.mxu0 %v1384
        %v1493 = vpop.f32.mrf.mxu0
        %v1494 = vadd.f32 0.0, %v1493
        %v1495 = vpop.f32.mrf.mxu0
        %v1496 = vpop.f32.mrf.mxu0
        %v1497 = vadd.f32 0.0, %v1496
        %v1498 = vpop.f32.mrf.mxu0
        %1499 = vmatprep.mubr.bf16.mxu0 0
        %1500 = vmatmul.mubr.bf16.gmra.mxu0 %v1387
        %v1501 = vpop.f32.mrf.mxu0
        %v1502 = vadd.f32 0.0, %v1501
        %v1503 = vpop.f32.mrf.mxu0
        %v1504 = vpop.f32.mrf.mxu0
        %v1505 = vadd.f32 0.0, %v1504
        %v1506 = vpop.f32.mrf.mxu0
        %1507 = vmatprep.mubr.bf16.mxu0 0
        %1508 = vmatmul.mubr.bf16.gmra.mxu0 %v1390
        %v1509 = vpop.f32.mrf.mxu0
        %v1510 = vadd.f32 0.0, %v1509
        %v1511 = vpop.f32.mrf.mxu0
        %v1512 = vpop.f32.mrf.mxu0
        %v1513 = vadd.f32 0.0, %v1512
        %v1514 = vpop.f32.mrf.mxu0
        %1515 = vmatprep.mubr.bf16.mxu0 0
        %1516 = vmatmul.mubr.bf16.gmra.mxu0 %v1393
        %v1517 = vpop.f32.mrf.mxu0
        %v1518 = vadd.f32 0.0, %v1517
        %v1519 = vpop.f32.mrf.mxu0
        %v1520 = vpop.f32.mrf.mxu0
        %v1521 = vadd.f32 0.0, %v1520
        %v1522 = vpop.f32.mrf.mxu0
        %1523 = vdwg.mxu0
        %v1528 = vunpack.c.l.b16 %v1338
        %v1529 = vunpack.c.l.b16 %v1339
        %v1530 = vunpack.c.l.b16 %v1340
        %v1531 = vunpack.c.l.b16 %v1341
        %v1532 = vpack.c.b16 %v1529, %v1528
        %v1533 = vpack.c.b16 %v1531, %v1530
        %1536 = vmatprep.subr.bf16.mxu0 0
        %1537 = vmatpush1.bf16.msra.mxu0 0
        %1538 = vmatprep.subr.bf16.mxu0 0
        %1539 = vmatpush1.bf16.msra.mxu0 0
        %1540 = vmatprep.subr.bf16.mxu0 0
        %1541 = vmatpush1.bf16.msra.mxu0 0
        %1542 = vmatprep.subr.bf16.mxu0 0
        %1543 = vmatpush1.bf16.msra.mxu0 0
        %1544 = vmatprep.subr.bf16.mxu0 0
        %1545 = vmatpush1.bf16.msra.mxu0 0
        %1546 = vmatprep.subr.bf16.mxu0 0
        %1547 = vmatpush1.bf16.msra.mxu0 0
        %1548 = vmatprep.subr.bf16.mxu0 0
        %1549 = vmatpush1.bf16.msra.mxu0 %v1533
        %1550 = vmatprep.subr.bf16.mxu0 0
        %1551 = vmatpush1.bf16.msra.mxu0 %v1532
        %1552 = vmatprep.subr.bf16.mxu0 0
        %1553 = vmatpush2.bf16.msra.mxu0 0
        %1554 = vmatprep.subr.bf16.mxu0 0
        %1555 = vmatpush2.bf16.msra.mxu0 0
        %1556 = vmatprep.subr.bf16.mxu0 0
        %1557 = vmatpush2.bf16.msra.mxu0 0
        %1558 = vmatprep.subr.bf16.mxu0 0
        %1559 = vmatpush2.bf16.msra.mxu0 0
        %1560 = vmatprep.subr.bf16.mxu0 0
        %1561 = vmatpush2.bf16.msra.mxu0 0
        %1562 = vmatprep.subr.bf16.mxu0 0
        %1563 = vmatpush2.bf16.msra.mxu0 0
        %1564 = vmatprep.subr.bf16.mxu0 0
        %1565 = vmatpush2.bf16.msra.mxu0 0
        %1566 = vmatprep.subr.bf16.mxu0 0
        %1567 = vmatpush2.bf16.msra.mxu0 0
        %1568 = vmatprep.mubr.bf16.mxu0 0
        %1569 = vmatmul.mubr.bf16.gmra.mxu0 %v1360
        %v1570 = vpop.f32.mrf.mxu0
        %v1571 = vadd.f32 %v1433, %v1570
        %v1572 = vpop.f32.mrf.mxu0
        %v1573 = vpop.f32.mrf.mxu0
        %v1574 = vadd.f32 %v1438, %v1573
        %v1575 = vpop.f32.mrf.mxu0
        %1576 = vmatprep.mubr.bf16.mxu0 0
        %1577 = vmatmul.mubr.bf16.gmra.mxu0 %v1363
        %v1578 = vpop.f32.mrf.mxu0
        %v1579 = vadd.f32 %v1441, %v1578
        %v1580 = vpop.f32.mrf.mxu0
        %v1581 = vpop.f32.mrf.mxu0
        %v1582 = vadd.f32 %v1446, %v1581
        %v1583 = vpop.f32.mrf.mxu0
        %1584 = vmatprep.mubr.bf16.mxu0 0
        %1585 = vmatmul.mubr.bf16.gmra.mxu0 %v1366
        %v1586 = vpop.f32.mrf.mxu0
        %v1587 = vadd.f32 %v1449, %v1586
        %v1588 = vpop.f32.mrf.mxu0
        %v1589 = vpop.f32.mrf.mxu0
        %v1590 = vadd.f32 %v1454, %v1589
        %v1591 = vpop.f32.mrf.mxu0
        %1592 = vmatprep.mubr.bf16.mxu0 0
        %1593 = vmatmul.mubr.bf16.gmra.mxu0 %v1369
        %v1594 = vpop.f32.mrf.mxu0
        %v1595 = vadd.f32 %v1457, %v1594
        %v1596 = vpop.f32.mrf.mxu0
        %v1597 = vpop.f32.mrf.mxu0
        %v1598 = vadd.f32 %v1462, %v1597
        %v1599 = vpop.f32.mrf.mxu0
        %1600 = vmatprep.mubr.bf16.mxu0 0
        %1601 = vmatmul.mubr.bf16.gmra.mxu0 %v1372
        %v1602 = vpop.f32.mrf.mxu0
        %v1603 = vadd.f32 %v1465, %v1602
        %v1604 = vpop.f32.mrf.mxu0
        %v1605 = vpop.f32.mrf.mxu0
        %v1606 = vadd.f32 %v1470, %v1605
        %v1607 = vpop.f32.mrf.mxu0
        %1608 = vmatprep.mubr.bf16.mxu0 0
        %1609 = vmatmul.mubr.bf16.gmra.mxu0 %v1375
        %v1610 = vpop.f32.mrf.mxu0
        %v1611 = vadd.f32 %v1473, %v1610
        %v1612 = vpop.f32.mrf.mxu0
        %v1613 = vpop.f32.mrf.mxu0
        %v1614 = vadd.f32 %v1478, %v1613
        %v1615 = vpop.f32.mrf.mxu0
        %1616 = vmatprep.mubr.bf16.mxu0 0
        %1617 = vmatmul.mubr.bf16.gmra.mxu0 %v1378
        %v1618 = vpop.f32.mrf.mxu0
        %v1619 = vadd.f32 %v1481, %v1618
        %v1620 = vpop.f32.mrf.mxu0
        %v1621 = vpop.f32.mrf.mxu0
        %v1622 = vadd.f32 %v1486, %v1621
        %v1623 = vpop.f32.mrf.mxu0
        %1624 = vmatprep.mubr.bf16.mxu0 0
        %1625 = vmatmul.mubr.bf16.gmra.mxu0 %v1381
        %v1626 = vpop.f32.mrf.mxu0
        %v1627 = vadd.f32 %v1489, %v1626
        %v1628 = vpop.f32.mrf.mxu0
        %v1629 = vpop.f32.mrf.mxu0
        %v1630 = vadd.f32 %v1494, %v1629
        %v1631 = vpop.f32.mrf.mxu0
        %1632 = vmatprep.mubr.bf16.mxu0 0
        %1633 = vmatmul.mubr.bf16.gmra.mxu0 %v1384
        %v1634 = vpop.f32.mrf.mxu0
        %v1635 = vadd.f32 %v1497, %v1634
        %v1636 = vpop.f32.mrf.mxu0
        %v1637 = vpop.f32.mrf.mxu0
        %v1638 = vadd.f32 %v1502, %v1637
        %v1639 = vpop.f32.mrf.mxu0
        %1640 = vmatprep.mubr.bf16.mxu0 0
        %1641 = vmatmul.mubr.bf16.gmra.mxu0 %v1387
        %v1642 = vpop.f32.mrf.mxu0
        %v1643 = vadd.f32 %v1505, %v1642
        %v1644 = vpop.f32.mrf.mxu0
        %v1645 = vpop.f32.mrf.mxu0
        %v1646 = vadd.f32 %v1510, %v1645
        %v1647 = vpop.f32.mrf.mxu0
        %1648 = vmatprep.mubr.bf16.mxu0 0
        %1649 = vmatmul.mubr.bf16.gmra.mxu0 %v1390
        %v1650 = vpop.f32.mrf.mxu0
        %v1651 = vadd.f32 %v1513, %v1650
        %v1652 = vpop.f32.mrf.mxu0
        %v1653 = vpop.f32.mrf.mxu0
        %v1654 = vadd.f32 %v1518, %v1653
        %v1655 = vpop.f32.mrf.mxu0
        %1656 = vmatprep.mubr.bf16.mxu0 0
        %1657 = vmatmul.mubr.bf16.gmra.mxu0 %v1393
        %v1658 = vpop.f32.mrf.mxu0
        %v1659 = vadd.f32 %v1521, %v1658
        %v1660 = vpop.f32.mrf.mxu0
        %v1661 = vpop.f32.mrf.mxu0
        %v1662 = vadd.f32 %v1430, %v1661
        %v1663 = vpop.f32.mrf.mxu0
        %1664 = vdwg.mxu0
        %s1665 = scalar_lea.vmem %s3, 32
        %v1666 = vld [vmem:[%s1665] sm:$0xf]
        %v1667 = vld [vmem:[%s1665 + $0x4] sm:$0xf]
        %v1668 = vld [vmem:[%s1665 + $0x8] sm:$0xf]
        %v1669 = vld [vmem:[%s1665 + $0xc] sm:$0xf]
        %v1674 = vunpack.c.l.b16 %v1666
        %v1675 = vunpack.c.l.b16 %v1667
        %v1676 = vunpack.c.l.b16 %v1668
        %v1677 = vunpack.c.l.b16 %v1669
        %v1678 = vpack.c.b16 %v1675, %v1674
        %v1679 = vpack.c.b16 %v1677, %v1676
        %1682 = vmatprep.subr.bf16.mxu0 0
        %1683 = vmatpush1.bf16.msra.mxu0 0
        %1684 = vmatprep.subr.bf16.mxu0 0
        %1685 = vmatpush1.bf16.msra.mxu0 0
        %1686 = vmatprep.subr.bf16.mxu0 0
        %1687 = vmatpush1.bf16.msra.mxu0 0
        %1688 = vmatprep.subr.bf16.mxu0 0
        %1689 = vmatpush1.bf16.msra.mxu0 0
        %1690 = vmatprep.subr.bf16.mxu0 0
        %1691 = vmatpush1.bf16.msra.mxu0 0
        %1692 = vmatprep.subr.bf16.mxu0 0
        %1693 = vmatpush1.bf16.msra.mxu0 0
        %1694 = vmatprep.subr.bf16.mxu0 0
        %1695 = vmatpush1.bf16.msra.mxu0 %v1679
        %1696 = vmatprep.subr.bf16.mxu0 0
        %1697 = vmatpush1.bf16.msra.mxu0 %v1678
        %1698 = vmatprep.subr.bf16.mxu0 0
        %1699 = vmatpush2.bf16.msra.mxu0 0
        %1700 = vmatprep.subr.bf16.mxu0 0
        %1701 = vmatpush2.bf16.msra.mxu0 0
        %1702 = vmatprep.subr.bf16.mxu0 0
        %1703 = vmatpush2.bf16.msra.mxu0 0
        %1704 = vmatprep.subr.bf16.mxu0 0
        %1705 = vmatpush2.bf16.msra.mxu0 0
        %1706 = vmatprep.subr.bf16.mxu0 0
        %1707 = vmatpush2.bf16.msra.mxu0 0
        %1708 = vmatprep.subr.bf16.mxu0 0
        %1709 = vmatpush2.bf16.msra.mxu0 0
        %1710 = vmatprep.subr.bf16.mxu0 0
        %1711 = vmatpush2.bf16.msra.mxu0 0
        %1712 = vmatprep.subr.bf16.mxu0 0
        %1713 = vmatpush2.bf16.msra.mxu0 0
        %1714 = vmatprep.mubr.bf16.mxu0 0
        %1715 = vmatmul.mubr.bf16.gmra.mxu0 %v1360
        %v1716 = vpop.f32.mrf.mxu0
        %v1717 = vadd.f32 0.0, %v1716
        %v1718 = vpop.f32.mrf.mxu0
        %v1719 = vpop.f32.mrf.mxu0
        %v1720 = vadd.f32 0.0, %v1719
        %v1721 = vpop.f32.mrf.mxu0
        %1722 = vmatprep.mubr.bf16.mxu0 0
        %1723 = vmatmul.mubr.bf16.gmra.mxu0 %v1363
        %v1724 = vpop.f32.mrf.mxu0
        %v1725 = vadd.f32 0.0, %v1724
        %v1726 = vpop.f32.mrf.mxu0
        %v1727 = vpop.f32.mrf.mxu0
        %v1728 = vadd.f32 0.0, %v1727
        %v1729 = vpop.f32.mrf.mxu0
        %1730 = vmatprep.mubr.bf16.mxu0 0
        %1731 = vmatmul.mubr.bf16.gmra.mxu0 %v1366
        %v1732 = vpop.f32.mrf.mxu0
        %v1733 = vadd.f32 0.0, %v1732
        %v1734 = vpop.f32.mrf.mxu0
        %v1735 = vpop.f32.mrf.mxu0
        %v1736 = vadd.f32 0.0, %v1735
        %v1737 = vpop.f32.mrf.mxu0
        %1738 = vmatprep.mubr.bf16.mxu0 0
        %1739 = vmatmul.mubr.bf16.gmra.mxu0 %v1369
        %v1740 = vpop.f32.mrf.mxu0
        %v1741 = vadd.f32 0.0, %v1740
        %v1742 = vpop.f32.mrf.mxu0
        %v1743 = vpop.f32.mrf.mxu0
        %v1744 = vadd.f32 0.0, %v1743
        %v1745 = vpop.f32.mrf.mxu0
        %1746 = vmatprep.mubr.bf16.mxu0 0
        %1747 = vmatmul.mubr.bf16.gmra.mxu0 %v1372
        %v1748 = vpop.f32.mrf.mxu0
        %v1749 = vadd.f32 0.0, %v1748
        %v1750 = vpop.f32.mrf.mxu0
        %v1751 = vpop.f32.mrf.mxu0
        %v1752 = vadd.f32 0.0, %v1751
        %v1753 = vpop.f32.mrf.mxu0
        %1754 = vmatprep.mubr.bf16.mxu0 0
        %1755 = vmatmul.mubr.bf16.gmra.mxu0 %v1375
        %v1756 = vpop.f32.mrf.mxu0
        %v1757 = vadd.f32 0.0, %v1756
        %v1758 = vpop.f32.mrf.mxu0
        %v1759 = vpop.f32.mrf.mxu0
        %v1760 = vadd.f32 0.0, %v1759
        %v1761 = vpop.f32.mrf.mxu0
        %1762 = vmatprep.mubr.bf16.mxu0 0
        %1763 = vmatmul.mubr.bf16.gmra.mxu0 %v1378
        %v1764 = vpop.f32.mrf.mxu0
        %v1765 = vadd.f32 0.0, %v1764
        %v1766 = vpop.f32.mrf.mxu0
        %v1767 = vpop.f32.mrf.mxu0
        %v1768 = vadd.f32 0.0, %v1767
        %v1769 = vpop.f32.mrf.mxu0
        %1770 = vmatprep.mubr.bf16.mxu0 0
        %1771 = vmatmul.mubr.bf16.gmra.mxu0 %v1381
        %v1772 = vpop.f32.mrf.mxu0
        %v1773 = vadd.f32 0.0, %v1772
        %v1774 = vpop.f32.mrf.mxu0
        %v1775 = vpop.f32.mrf.mxu0
        %v1776 = vadd.f32 0.0, %v1775
        %v1777 = vpop.f32.mrf.mxu0
        %1778 = vmatprep.mubr.bf16.mxu0 0
        %1779 = vmatmul.mubr.bf16.gmra.mxu0 %v1384
        %v1780 = vpop.f32.mrf.mxu0
        %v1781 = vadd.f32 0.0, %v1780
        %v1782 = vpop.f32.mrf.mxu0
        %v1783 = vpop.f32.mrf.mxu0
        %v1784 = vadd.f32 0.0, %v1783
        %v1785 = vpop.f32.mrf.mxu0
        %1786 = vmatprep.mubr.bf16.mxu0 0
        %1787 = vmatmul.mubr.bf16.gmra.mxu0 %v1387
        %v1788 = vpop.f32.mrf.mxu0
        %v1789 = vadd.f32 0.0, %v1788
        %v1790 = vpop.f32.mrf.mxu0
        %v1791 = vpop.f32.mrf.mxu0
        %v1792 = vadd.f32 0.0, %v1791
        %v1793 = vpop.f32.mrf.mxu0
        %1794 = vmatprep.mubr.bf16.mxu0 0
        %1795 = vmatmul.mubr.bf16.gmra.mxu0 %v1390
        %v1796 = vpop.f32.mrf.mxu0
        %v1797 = vadd.f32 0.0, %v1796
        %v1798 = vpop.f32.mrf.mxu0
        %v1799 = vpop.f32.mrf.mxu0
        %v1800 = vadd.f32 0.0, %v1799
        %v1801 = vpop.f32.mrf.mxu0
        %1802 = vmatprep.mubr.bf16.mxu0 0
        %1803 = vmatmul.mubr.bf16.gmra.mxu0 %v1393
        %v1804 = vpop.f32.mrf.mxu0
        %v1805 = vadd.f32 0.0, %v1804
        %v1806 = vpop.f32.mrf.mxu0
        %v1807 = vpop.f32.mrf.mxu0
        %v1808 = vadd.f32 0.0, %v1807
        %v1809 = vpop.f32.mrf.mxu0
        %1810 = vdwg.mxu0
        %v1811 = vadd.f32 %v1571, %v1725
        %v1812 = vadd.f32 %v1574, %v1728
        %v1813 = vadd.f32 %v1579, %v1733
        %v1814 = vadd.f32 %v1582, %v1736
        %v1815 = vadd.f32 %v1587, %v1741
        %v1816 = vadd.f32 %v1590, %v1744
        %v1817 = vadd.f32 %v1595, %v1749
        %v1818 = vadd.f32 %v1598, %v1752
        %v1819 = vadd.f32 %v1603, %v1757
        %v1820 = vadd.f32 %v1606, %v1760
        %v1821 = vadd.f32 %v1611, %v1765
        %v1822 = vadd.f32 %v1614, %v1768
        %v1823 = vadd.f32 %v1619, %v1773
        %v1824 = vadd.f32 %v1622, %v1776
        %v1825 = vadd.f32 %v1627, %v1781
        %v1826 = vadd.f32 %v1630, %v1784
        %v1827 = vadd.f32 %v1635, %v1789
        %v1828 = vadd.f32 %v1638, %v1792
        %v1829 = vadd.f32 %v1643, %v1797
        %v1830 = vadd.f32 %v1646, %v1800
        %v1831 = vadd.f32 %v1651, %v1805
        %v1832 = vadd.f32 %v1654, %v1808
        %v1833 = vadd.f32 %v1659, %v1717
        %v1834 = vadd.f32 %v1662, %v1720
        %v1835 = vld [vmem:[%s4] sm:$0x1]
        %v1837 = vlaneseq
        %v1838 = vshrl.u32 %v1837, 7
        %v1839 = vsub.s32 0, %v1838
        %v1840 = vrot.slane %v1835, %v1839
        %v1842 = vadd.f32 %v1811, %v1840
        %v1843 = vadd.f32 %v1812, %v1840
        %v1844 = vadd.f32 %v1813, %v1840
        %v1845 = vadd.f32 %v1814, %v1840
        %v1846 = vadd.f32 %v1815, %v1840
        %v1847 = vadd.f32 %v1816, %v1840
        %v1848 = vadd.f32 %v1817, %v1840
        %v1849 = vadd.f32 %v1818, %v1840
        %v1850 = vadd.f32 %v1819, %v1840
        %v1851 = vadd.f32 %v1820, %v1840
        %v1852 = vadd.f32 %v1821, %v1840
        %v1853 = vadd.f32 %v1822, %v1840
        %v1854 = vadd.f32 %v1823, %v1840
        %v1855 = vadd.f32 %v1824, %v1840
        %v1856 = vadd.f32 %v1825, %v1840
        %v1857 = vadd.f32 %v1826, %v1840
        %v1858 = vadd.f32 %v1827, %v1840
        %v1859 = vadd.f32 %v1828, %v1840
        %v1860 = vadd.f32 %v1829, %v1840
        %v1861 = vadd.f32 %v1830, %v1840
        %v1862 = vadd.f32 %v1831, %v1840
        %v1863 = vadd.f32 %v1832, %v1840
        %v1864 = vadd.f32 %v1833, %v1840
        %v1865 = vadd.f32 %v1834, %v1840
        %v1866 = vmax.f32 %v1842, 0.0
        %v1867 = vmax.f32 %v1843, 0.0
        %v1868 = vmax.f32 %v1844, 0.0
        %v1869 = vmax.f32 %v1845, 0.0
        %v1870 = vmax.f32 %v1846, 0.0
        %v1871 = vmax.f32 %v1847, 0.0
        %v1872 = vmax.f32 %v1848, 0.0
        %v1873 = vmax.f32 %v1849, 0.0
        %v1874 = vmax.f32 %v1850, 0.0
        %v1875 = vmax.f32 %v1851, 0.0
        %v1876 = vmax.f32 %v1852, 0.0
        %v1877 = vmax.f32 %v1853, 0.0
        %v1878 = vmax.f32 %v1854, 0.0
        %v1879 = vmax.f32 %v1855, 0.0
        %v1880 = vmax.f32 %v1856, 0.0
        %v1881 = vmax.f32 %v1857, 0.0
        %v1882 = vmax.f32 %v1858, 0.0
        %v1883 = vmax.f32 %v1859, 0.0
        %v1884 = vmax.f32 %v1860, 0.0
        %v1885 = vmax.f32 %v1861, 0.0
        %v1886 = vmax.f32 %v1862, 0.0
        %v1887 = vmax.f32 %v1863, 0.0
        %v1888 = vmax.f32 %v1864, 0.0
        %v1889 = vmax.f32 %v1865, 0.0
        %v1890 = vpack.c.bf16 %v1867, %v1866
        %v1891 = vpack.c.bf16 %v1869, %v1868
        %v1892 = vpack.c.bf16 %v1871, %v1870
        %v1893 = vpack.c.bf16 %v1873, %v1872
        %v1894 = vpack.c.bf16 %v1875, %v1874
        %v1895 = vpack.c.bf16 %v1877, %v1876
        %v1896 = vpack.c.bf16 %v1879, %v1878
        %v1897 = vpack.c.bf16 %v1881, %v1880
        %v1898 = vpack.c.bf16 %v1883, %v1882
        %v1899 = vpack.c.bf16 %v1885, %v1884
        %v1900 = vpack.c.bf16 %v1887, %v1886
        %v1901 = vpack.c.bf16 %v1889, %v1888
        %v1902 = vld [vmem:[%s5] sm:$0xf]
        %v1903 = vld [vmem:[%s5 + $0x4] sm:$0xf]
        %v1904 = vld [vmem:[%s5 + $0x8] sm:$0xf]
        %v1905 = vld [vmem:[%s5 + $0xc] sm:$0xf]
        %v1906 = vld [vmem:[%s5 + $0x10] sm:$0xf]
        %v1907 = vld [vmem:[%s5 + $0x14] sm:$0xf]
        %v1908 = vld [vmem:[%s5 + $0x18] sm:$0xf]
        %v1909 = vld [vmem:[%s5 + $0x1c] sm:$0xf]
        %s1910 = scalar_lea.vmem %s5, 32
        %v1911 = vld [vmem:[%s1910] sm:$0xf]
        %v1912 = vld [vmem:[%s1910 + $0x4] sm:$0xf]
        %v1913 = vld [vmem:[%s1910 + $0x8] sm:$0xf]
        %v1914 = vld [vmem:[%s1910 + $0xc] sm:$0xf]
        %v1915 = vld [vmem:[%s1910 + $0x10] sm:$0xf]
        %v1916 = vld [vmem:[%s1910 + $0x14] sm:$0xf]
        %v1917 = vld [vmem:[%s1910 + $0x18] sm:$0xf]
        %v1918 = vld [vmem:[%s1910 + $0x1c] sm:$0xf]
        %v1927 = vunpack.c.l.b16 %v1911
        %v1928 = vunpack.c.l.b16 %v1912
        %v1929 = vunpack.c.l.b16 %v1913
        %v1930 = vunpack.c.l.b16 %v1914
        %v1931 = vunpack.c.l.b16 %v1915
        %v1932 = vunpack.c.l.b16 %v1916
        %v1933 = vunpack.c.l.b16 %v1917
        %v1934 = vunpack.c.l.b16 %v1918
        %v1935 = vpack.c.b16 %v1928, %v1927
        %v1936 = vpack.c.b16 %v1930, %v1929
        %v1937 = vpack.c.b16 %v1932, %v1931
        %v1938 = vpack.c.b16 %v1934, %v1933
        %vm1943 = vcmask 523264
        %v1945 = vsel %vm1943, %v1890, 0
        %v1948 = vsel %vm1943, %v1891, 0
        %v1951 = vsel %vm1943, %v1892, 0
        %v1954 = vsel %vm1943, %v1893, 0
        %v1957 = vsel %vm1943, %v1894, 0
        %v1960 = vsel %vm1943, %v1895, 0
        %v1963 = vsel %vm1943, %v1896, 0
        %v1966 = vsel %vm1943, %v1897, 0
        %v1969 = vsel %vm1943, %v1898, 0
        %v1972 = vsel %vm1943, %v1899, 0
        %v1975 = vsel %vm1943, %v1900, 0
        %v1978 = vsel %vm1943, %v1901, 0
        %1980 = vmatprep.subr.bf16.mxu0 0
        %1981 = vmatpush1.bf16.msra.mxu0 0
        %1982 = vmatprep.subr.bf16.mxu0 0
        %1983 = vmatpush1.bf16.msra.mxu0 0
        %1984 = vmatprep.subr.bf16.mxu0 0
        %1985 = vmatpush1.bf16.msra.mxu0 0
        %1986 = vmatprep.subr.bf16.mxu0 0
        %1987 = vmatpush1.bf16.msra.mxu0 0
        %1988 = vmatprep.subr.bf16.mxu0 0
        %1989 = vmatpush1.bf16.msra.mxu0 %v1938
        %1990 = vmatprep.subr.bf16.mxu0 0
        %1991 = vmatpush1.bf16.msra.mxu0 %v1937
        %1992 = vmatprep.subr.bf16.mxu0 0
        %1993 = vmatpush1.bf16.msra.mxu0 %v1936
        %1994 = vmatprep.subr.bf16.mxu0 0
        %1995 = vmatpush1.bf16.msra.mxu0 %v1935
        %1996 = vmatprep.subr.bf16.mxu0 0
        %1997 = vmatpush2.bf16.msra.mxu0 0
        %1998 = vmatprep.subr.bf16.mxu0 0
        %1999 = vmatpush2.bf16.msra.mxu0 0
        %2000 = vmatprep.subr.bf16.mxu0 0
        %2001 = vmatpush2.bf16.msra.mxu0 0
        %2002 = vmatprep.subr.bf16.mxu0 0
        %2003 = vmatpush2.bf16.msra.mxu0 0
        %2004 = vmatprep.subr.bf16.mxu0 0
        %2005 = vmatpush2.bf16.msra.mxu0 0
        %2006 = vmatprep.subr.bf16.mxu0 0
        %2007 = vmatpush2.bf16.msra.mxu0 0
        %2008 = vmatprep.subr.bf16.mxu0 0
        %2009 = vmatpush2.bf16.msra.mxu0 0
        %2010 = vmatprep.subr.bf16.mxu0 0
        %2011 = vmatpush2.bf16.msra.mxu0 0
        %2012 = vmatprep.mubr.bf16.mxu0 0
        %2013 = vmatmul.mubr.bf16.gmra.mxu0 %v1945
        %v2014 = vpop.f32.mrf.mxu0
        %v2015 = vpop.f32.mrf.mxu0
        %v2016 = vpop.f32.mrf.mxu0
        %v2017 = vadd.f32 0.0, %v2016
        %v2018 = vpop.f32.mrf.mxu0
        %2019 = vmatprep.mubr.bf16.mxu0 0
        %2020 = vmatmul.mubr.bf16.gmra.mxu0 %v1948
        %v2021 = vpop.f32.mrf.mxu0
        %v2022 = vadd.f32 0.0, %v2021
        %v2023 = vpop.f32.mrf.mxu0
        %v2024 = vpop.f32.mrf.mxu0
        %v2025 = vadd.f32 0.0, %v2024
        %v2026 = vpop.f32.mrf.mxu0
        %2027 = vmatprep.mubr.bf16.mxu0 0
        %2028 = vmatmul.mubr.bf16.gmra.mxu0 %v1951
        %v2029 = vpop.f32.mrf.mxu0
        %v2030 = vadd.f32 0.0, %v2029
        %v2031 = vpop.f32.mrf.mxu0
        %v2032 = vpop.f32.mrf.mxu0
        %v2033 = vadd.f32 0.0, %v2032
        %v2034 = vpop.f32.mrf.mxu0
        %2035 = vmatprep.mubr.bf16.mxu0 0
        %2036 = vmatmul.mubr.bf16.gmra.mxu0 %v1954
        %v2037 = vpop.f32.mrf.mxu0
        %v2038 = vadd.f32 0.0, %v2037
        %v2039 = vpop.f32.mrf.mxu0
        %v2040 = vpop.f32.mrf.mxu0
        %v2041 = vadd.f32 0.0, %v2040
        %v2042 = vpop.f32.mrf.mxu0
        %2043 = vmatprep.mubr.bf16.mxu0 0
        %2044 = vmatmul.mubr.bf16.gmra.mxu0 %v1957
        %v2045 = vpop.f32.mrf.mxu0
        %v2046 = vadd.f32 0.0, %v2045
        %v2047 = vpop.f32.mrf.mxu0
        %v2048 = vpop.f32.mrf.mxu0
        %v2049 = vadd.f32 0.0, %v2048
        %v2050 = vpop.f32.mrf.mxu0
        %2051 = vmatprep.mubr.bf16.mxu0 0
        %2052 = vmatmul.mubr.bf16.gmra.mxu0 %v1960
        %v2053 = vpop.f32.mrf.mxu0
        %v2054 = vpop.f32.mrf.mxu0
        %v2055 = vpop.f32.mrf.mxu0
        %v2056 = vpop.f32.mrf.mxu0
        %2057 = vmatprep.mubr.bf16.mxu0 0
        %2058 = vmatmul.mubr.bf16.gmra.mxu0 %v1963
        %v2059 = vpop.f32.mrf.mxu0
        %v2060 = vpop.f32.mrf.mxu0
        %v2061 = vpop.f32.mrf.mxu0
        %v2062 = vpop.f32.mrf.mxu0
        %2063 = vmatprep.mubr.bf16.mxu0 0
        %2064 = vmatmul.mubr.bf16.gmra.mxu0 %v1966
        %v2065 = vpop.f32.mrf.mxu0
        %v2066 = vpop.f32.mrf.mxu0
        %v2067 = vpop.f32.mrf.mxu0
        %v2068 = vpop.f32.mrf.mxu0
        %2069 = vmatprep.mubr.bf16.mxu0 0
        %2070 = vmatmul.mubr.bf16.gmra.mxu0 %v1969
        %v2071 = vpop.f32.mrf.mxu0
        %v2072 = vpop.f32.mrf.mxu0
        %v2073 = vpop.f32.mrf.mxu0
        %v2074 = vpop.f32.mrf.mxu0
        %2075 = vmatprep.mubr.bf16.mxu0 0
        %2076 = vmatmul.mubr.bf16.gmra.mxu0 %v1972
        %v2077 = vpop.f32.mrf.mxu0
        %v2078 = vpop.f32.mrf.mxu0
        %v2079 = vpop.f32.mrf.mxu0
        %v2080 = vpop.f32.mrf.mxu0
        %2081 = vmatprep.mubr.bf16.mxu0 0
        %2082 = vmatmul.mubr.bf16.gmra.mxu0 %v1975
        %v2083 = vpop.f32.mrf.mxu0
        %v2084 = vpop.f32.mrf.mxu0
        %v2085 = vpop.f32.mrf.mxu0
        %v2086 = vpop.f32.mrf.mxu0
        %2087 = vmatprep.mubr.bf16.mxu0 0
        %2088 = vmatmul.mubr.bf16.gmra.mxu0 %v1978
        %v2089 = vpop.f32.mrf.mxu0
        %v2090 = vpop.f32.mrf.mxu0
        %v2091 = vpop.f32.mrf.mxu0
        %v2092 = vpop.f32.mrf.mxu0
        %2093 = vdwg.mxu0
        %v2102 = vunpack.c.l.b16 %v1902
        %v2103 = vunpack.c.l.b16 %v1903
        %v2104 = vunpack.c.l.b16 %v1904
        %v2105 = vunpack.c.l.b16 %v1905
        %v2106 = vunpack.c.l.b16 %v1906
        %v2107 = vunpack.c.l.b16 %v1907
        %v2108 = vunpack.c.l.b16 %v1908
        %v2109 = vunpack.c.l.b16 %v1909
        %v2110 = vpack.c.b16 %v2103, %v2102
        %v2111 = vpack.c.b16 %v2105, %v2104
        %v2112 = vpack.c.b16 %v2107, %v2106
        %v2113 = vpack.c.b16 %v2109, %v2108
        %2118 = vmatprep.subr.bf16.mxu0 0
        %2119 = vmatpush1.bf16.msra.mxu0 0
        %2120 = vmatprep.subr.bf16.mxu0 0
        %2121 = vmatpush1.bf16.msra.mxu0 0
        %2122 = vmatprep.subr.bf16.mxu0 0
        %2123 = vmatpush1.bf16.msra.mxu0 0
        %2124 = vmatprep.subr.bf16.mxu0 0
        %2125 = vmatpush1.bf16.msra.mxu0 0
        %2126 = vmatprep.subr.bf16.mxu0 0
        %2127 = vmatpush1.bf16.msra.mxu0 %v2113
        %2128 = vmatprep.subr.bf16.mxu0 0
        %2129 = vmatpush1.bf16.msra.mxu0 %v2112
        %2130 = vmatprep.subr.bf16.mxu0 0
        %2131 = vmatpush1.bf16.msra.mxu0 %v2111
        %2132 = vmatprep.subr.bf16.mxu0 0
        %2133 = vmatpush1.bf16.msra.mxu0 %v2110
        %2134 = vmatprep.subr.bf16.mxu0 0
        %2135 = vmatpush2.bf16.msra.mxu0 0
        %2136 = vmatprep.subr.bf16.mxu0 0
        %2137 = vmatpush2.bf16.msra.mxu0 0
        %2138 = vmatprep.subr.bf16.mxu0 0
        %2139 = vmatpush2.bf16.msra.mxu0 0
        %2140 = vmatprep.subr.bf16.mxu0 0
        %2141 = vmatpush2.bf16.msra.mxu0 0
        %2142 = vmatprep.subr.bf16.mxu0 0
        %2143 = vmatpush2.bf16.msra.mxu0 0
        %2144 = vmatprep.subr.bf16.mxu0 0
        %2145 = vmatpush2.bf16.msra.mxu0 0
        %2146 = vmatprep.subr.bf16.mxu0 0
        %2147 = vmatpush2.bf16.msra.mxu0 0
        %2148 = vmatprep.subr.bf16.mxu0 0
        %2149 = vmatpush2.bf16.msra.mxu0 0
        %2150 = vmatprep.mubr.bf16.mxu0 0
        %2151 = vmatmul.mubr.bf16.gmra.mxu0 %v1945
        %v2152 = vpop.f32.mrf.mxu0
        %v2153 = vadd.f32 %v2017, %v2152
        %v2154 = vpop.f32.mrf.mxu0
        %v2155 = vpop.f32.mrf.mxu0
        %v2156 = vadd.f32 %v2022, %v2155
        %v2157 = vpop.f32.mrf.mxu0
        %2158 = vmatprep.mubr.bf16.mxu0 0
        %2159 = vmatmul.mubr.bf16.gmra.mxu0 %v1948
        %v2160 = vpop.f32.mrf.mxu0
        %v2161 = vadd.f32 %v2025, %v2160
        %v2162 = vpop.f32.mrf.mxu0
        %v2163 = vpop.f32.mrf.mxu0
        %v2164 = vadd.f32 %v2030, %v2163
        %v2165 = vpop.f32.mrf.mxu0
        %2166 = vmatprep.mubr.bf16.mxu0 0
        %2167 = vmatmul.mubr.bf16.gmra.mxu0 %v1951
        %v2168 = vpop.f32.mrf.mxu0
        %v2169 = vadd.f32 %v2033, %v2168
        %v2170 = vpop.f32.mrf.mxu0
        %v2171 = vpop.f32.mrf.mxu0
        %v2172 = vadd.f32 %v2038, %v2171
        %v2173 = vpop.f32.mrf.mxu0
        %2174 = vmatprep.mubr.bf16.mxu0 0
        %2175 = vmatmul.mubr.bf16.gmra.mxu0 %v1954
        %v2176 = vpop.f32.mrf.mxu0
        %v2177 = vadd.f32 %v2041, %v2176
        %v2178 = vpop.f32.mrf.mxu0
        %v2179 = vpop.f32.mrf.mxu0
        %v2180 = vadd.f32 %v2046, %v2179
        %v2181 = vpop.f32.mrf.mxu0
        %2182 = vmatprep.mubr.bf16.mxu0 0
        %2183 = vmatmul.mubr.bf16.gmra.mxu0 %v1957
        %v2184 = vpop.f32.mrf.mxu0
        %v2185 = vadd.f32 %v2049, %v2184
        %v2186 = vpop.f32.mrf.mxu0
        %v2187 = vpop.f32.mrf.mxu0
        %v2188 = vpop.f32.mrf.mxu0
        %2189 = vmatprep.mubr.bf16.mxu0 0
        %2190 = vmatmul.mubr.bf16.gmra.mxu0 %v1960
        %v2191 = vpop.f32.mrf.mxu0
        %v2192 = vpop.f32.mrf.mxu0
        %v2193 = vpop.f32.mrf.mxu0
        %v2194 = vpop.f32.mrf.mxu0
        %2195 = vmatprep.mubr.bf16.mxu0 0
        %2196 = vmatmul.mubr.bf16.gmra.mxu0 %v1963
        %v2197 = vpop.f32.mrf.mxu0
        %v2198 = vpop.f32.mrf.mxu0
        %v2199 = vpop.f32.mrf.mxu0
        %v2200 = vpop.f32.mrf.mxu0
        %2201 = vmatprep.mubr.bf16.mxu0 0
        %2202 = vmatmul.mubr.bf16.gmra.mxu0 %v1966
        %v2203 = vpop.f32.mrf.mxu0
        %v2204 = vpop.f32.mrf.mxu0
        %v2205 = vpop.f32.mrf.mxu0
        %v2206 = vpop.f32.mrf.mxu0
        %2207 = vmatprep.mubr.bf16.mxu0 0
        %2208 = vmatmul.mubr.bf16.gmra.mxu0 %v1969
        %v2209 = vpop.f32.mrf.mxu0
        %v2210 = vpop.f32.mrf.mxu0
        %v2211 = vpop.f32.mrf.mxu0
        %v2212 = vpop.f32.mrf.mxu0
        %2213 = vmatprep.mubr.bf16.mxu0 0
        %2214 = vmatmul.mubr.bf16.gmra.mxu0 %v1972
        %v2215 = vpop.f32.mrf.mxu0
        %v2216 = vpop.f32.mrf.mxu0
        %v2217 = vpop.f32.mrf.mxu0
        %v2218 = vpop.f32.mrf.mxu0
        %2219 = vmatprep.mubr.bf16.mxu0 0
        %2220 = vmatmul.mubr.bf16.gmra.mxu0 %v1975
        %v2221 = vpop.f32.mrf.mxu0
        %v2222 = vpop.f32.mrf.mxu0
        %v2223 = vpop.f32.mrf.mxu0
        %v2224 = vpop.f32.mrf.mxu0
        %2225 = vmatprep.mubr.bf16.mxu0 0
        %2226 = vmatmul.mubr.bf16.gmra.mxu0 %v1978
        %v2227 = vpop.f32.mrf.mxu0
        %v2228 = vpop.f32.mrf.mxu0
        %v2229 = vpop.f32.mrf.mxu0
        %v2230 = vpop.f32.mrf.mxu0
        %2231 = vdwg.mxu0
        %s2232 = scalar_lea.vmem %s5, 64
        %v2233 = vld [vmem:[%s2232] sm:$0xf]
        %v2234 = vld [vmem:[%s2232 + $0x4] sm:$0xf]
        %v2235 = vld [vmem:[%s2232 + $0x8] sm:$0xf]
        %v2236 = vld [vmem:[%s2232 + $0xc] sm:$0xf]
        %v2237 = vld [vmem:[%s2232 + $0x10] sm:$0xf]
        %v2238 = vld [vmem:[%s2232 + $0x14] sm:$0xf]
        %v2239 = vld [vmem:[%s2232 + $0x18] sm:$0xf]
        %v2240 = vld [vmem:[%s2232 + $0x1c] sm:$0xf]
        %v2249 = vunpack.c.l.b16 %v2233
        %v2250 = vunpack.c.l.b16 %v2234
        %v2251 = vunpack.c.l.b16 %v2235
        %v2252 = vunpack.c.l.b16 %v2236
        %v2253 = vunpack.c.l.b16 %v2237
        %v2254 = vunpack.c.l.b16 %v2238
        %v2255 = vunpack.c.l.b16 %v2239
        %v2256 = vunpack.c.l.b16 %v2240
        %v2257 = vpack.c.b16 %v2250, %v2249
        %v2258 = vpack.c.b16 %v2252, %v2251
        %v2259 = vpack.c.b16 %v2254, %v2253
        %v2260 = vpack.c.b16 %v2256, %v2255
        %2265 = vmatprep.subr.bf16.mxu0 0
        %2266 = vmatpush1.bf16.msra.mxu0 0
        %2267 = vmatprep.subr.bf16.mxu0 0
        %2268 = vmatpush1.bf16.msra.mxu0 0
        %2269 = vmatprep.subr.bf16.mxu0 0
        %2270 = vmatpush1.bf16.msra.mxu0 0
        %2271 = vmatprep.subr.bf16.mxu0 0
        %2272 = vmatpush1.bf16.msra.mxu0 0
        %2273 = vmatprep.subr.bf16.mxu0 0
        %2274 = vmatpush1.bf16.msra.mxu0 %v2260
        %2275 = vmatprep.subr.bf16.mxu0 0
        %2276 = vmatpush1.bf16.msra.mxu0 %v2259
        %2277 = vmatprep.subr.bf16.mxu0 0
        %2278 = vmatpush1.bf16.msra.mxu0 %v2258
        %2279 = vmatprep.subr.bf16.mxu0 0
        %2280 = vmatpush1.bf16.msra.mxu0 %v2257
        %2281 = vmatprep.subr.bf16.mxu0 0
        %2282 = vmatpush2.bf16.msra.mxu0 0
        %2283 = vmatprep.subr.bf16.mxu0 0
        %2284 = vmatpush2.bf16.msra.mxu0 0
        %2285 = vmatprep.subr.bf16.mxu0 0
        %2286 = vmatpush2.bf16.msra.mxu0 0
        %2287 = vmatprep.subr.bf16.mxu0 0
        %2288 = vmatpush2.bf16.msra.mxu0 0
        %2289 = vmatprep.subr.bf16.mxu0 0
        %2290 = vmatpush2.bf16.msra.mxu0 0
        %2291 = vmatprep.subr.bf16.mxu0 0
        %2292 = vmatpush2.bf16.msra.mxu0 0
        %2293 = vmatprep.subr.bf16.mxu0 0
        %2294 = vmatpush2.bf16.msra.mxu0 0
        %2295 = vmatprep.subr.bf16.mxu0 0
        %2296 = vmatpush2.bf16.msra.mxu0 0
        %2297 = vmatprep.mubr.bf16.mxu0 0
        %2298 = vmatmul.mubr.bf16.gmra.mxu0 %v1945
        %v2299 = vpop.f32.mrf.mxu0
        %v2300 = vpop.f32.mrf.mxu0
        %v2301 = vpop.f32.mrf.mxu0
        %v2302 = vpop.f32.mrf.mxu0
        %2303 = vmatprep.mubr.bf16.mxu0 0
        %2304 = vmatmul.mubr.bf16.gmra.mxu0 %v1948
        %v2305 = vpop.f32.mrf.mxu0
        %v2306 = vadd.f32 0.0, %v2305
        %v2307 = vpop.f32.mrf.mxu0
        %v2308 = vpop.f32.mrf.mxu0
        %v2309 = vadd.f32 0.0, %v2308
        %v2310 = vpop.f32.mrf.mxu0
        %2311 = vmatprep.mubr.bf16.mxu0 0
        %2312 = vmatmul.mubr.bf16.gmra.mxu0 %v1951
        %v2313 = vpop.f32.mrf.mxu0
        %v2314 = vadd.f32 0.0, %v2313
        %v2315 = vpop.f32.mrf.mxu0
        %v2316 = vpop.f32.mrf.mxu0
        %v2317 = vadd.f32 0.0, %v2316
        %v2318 = vpop.f32.mrf.mxu0
        %2319 = vmatprep.mubr.bf16.mxu0 0
        %2320 = vmatmul.mubr.bf16.gmra.mxu0 %v1954
        %v2321 = vpop.f32.mrf.mxu0
        %v2322 = vadd.f32 0.0, %v2321
        %v2323 = vpop.f32.mrf.mxu0
        %v2324 = vpop.f32.mrf.mxu0
        %v2325 = vadd.f32 0.0, %v2324
        %v2326 = vpop.f32.mrf.mxu0
        %2327 = vmatprep.mubr.bf16.mxu0 0
        %2328 = vmatmul.mubr.bf16.gmra.mxu0 %v1957
        %v2329 = vpop.f32.mrf.mxu0
        %v2330 = vadd.f32 0.0, %v2329
        %v2331 = vpop.f32.mrf.mxu0
        %v2332 = vpop.f32.mrf.mxu0
        %v2333 = vadd.f32 0.0, %v2332
        %v2334 = vpop.f32.mrf.mxu0
        %2335 = vmatprep.mubr.bf16.mxu0 0
        %2336 = vmatmul.mubr.bf16.gmra.mxu0 %v1960
        %v2337 = vpop.f32.mrf.mxu0
        %v2338 = vadd.f32 0.0, %v2337
        %v2339 = vpop.f32.mrf.mxu0
        %v2340 = vpop.f32.mrf.mxu0
        %v2341 = vpop.f32.mrf.mxu0
        %2342 = vmatprep.mubr.bf16.mxu0 0
        %2343 = vmatmul.mubr.bf16.gmra.mxu0 %v1963
        %v2344 = vpop.f32.mrf.mxu0
        %v2345 = vpop.f32.mrf.mxu0
        %v2346 = vpop.f32.mrf.mxu0
        %v2347 = vpop.f32.mrf.mxu0
        %2348 = vmatprep.mubr.bf16.mxu0 0
        %2349 = vmatmul.mubr.bf16.gmra.mxu0 %v1966
        %v2350 = vpop.f32.mrf.mxu0
        %v2351 = vpop.f32.mrf.mxu0
        %v2352 = vpop.f32.mrf.mxu0
        %v2353 = vpop.f32.mrf.mxu0
        %2354 = vmatprep.mubr.bf16.mxu0 0
        %2355 = vmatmul.mubr.bf16.gmra.mxu0 %v1969
        %v2356 = vpop.f32.mrf.mxu0
        %v2357 = vpop.f32.mrf.mxu0
        %v2358 = vpop.f32.mrf.mxu0
        %v2359 = vpop.f32.mrf.mxu0
        %2360 = vmatprep.mubr.bf16.mxu0 0
        %2361 = vmatmul.mubr.bf16.gmra.mxu0 %v1972
        %v2362 = vpop.f32.mrf.mxu0
        %v2363 = vpop.f32.mrf.mxu0
        %v2364 = vpop.f32.mrf.mxu0
        %v2365 = vpop.f32.mrf.mxu0
        %2366 = vmatprep.mubr.bf16.mxu0 0
        %2367 = vmatmul.mubr.bf16.gmra.mxu0 %v1975
        %v2368 = vpop.f32.mrf.mxu0
        %v2369 = vpop.f32.mrf.mxu0
        %v2370 = vpop.f32.mrf.mxu0
        %v2371 = vpop.f32.mrf.mxu0
        %2372 = vmatprep.mubr.bf16.mxu0 0
        %2373 = vmatmul.mubr.bf16.gmra.mxu0 %v1978
        %v2374 = vpop.f32.mrf.mxu0
        %v2375 = vpop.f32.mrf.mxu0
        %v2376 = vpop.f32.mrf.mxu0
        %v2377 = vpop.f32.mrf.mxu0
        %2378 = vdwg.mxu0
        %v2379 = vadd.f32 %v2153, %v2306
        %v2380 = vadd.f32 %v2156, %v2309
        %v2381 = vadd.f32 %v2161, %v2314
        %v2382 = vadd.f32 %v2164, %v2317
        %v2383 = vadd.f32 %v2169, %v2322
        %v2384 = vadd.f32 %v2172, %v2325
        %v2385 = vadd.f32 %v2177, %v2330
        %v2386 = vadd.f32 %v2180, %v2333
        %v2387 = vadd.f32 %v2185, %v2338
        %v2388 = vld [vmem:[%s6] sm:$0x1]
        %v2390 = vlaneseq
        %v2391 = vshrl.u32 %v2390, 7
        %v2392 = vsub.s32 0, %v2391
        %v2393 = vrot.slane %v2388, %v2392
        %v2395 = vadd.f32 %v2379, %v2393
        %v2396 = vadd.f32 %v2380, %v2393
        %v2397 = vadd.f32 %v2381, %v2393
        %v2398 = vadd.f32 %v2382, %v2393
        %v2399 = vadd.f32 %v2383, %v2393
        %v2400 = vadd.f32 %v2384, %v2393
        %v2401 = vadd.f32 %v2385, %v2393
        %v2402 = vadd.f32 %v2386, %v2393
        %v2403 = vadd.f32 %v2387, %v2393
        %v2404 = vmax.f32 %v2395, %v2396
        %v2405 = vmax.f32 %v2404, %v2397
        %v2406 = vmax.f32 %v2405, %v2398
        %v2407 = vmax.f32 %v2406, %v2399
        %v2408 = vmax.f32 %v2407, %v2400
        %v2409 = vmax.f32 %v2408, %v2401
        %v2410 = vmax.f32 %v2409, %v2402
        %v2411 = vmax.f32 %v2410, %v2403
        %v2412 = vpack.c.bf16 %v2411, %v2411
        %v2413 = vld [vmem:[#allocation2] sm:$0xf]
        %v2414 = vld [vmem:[#allocation2 + $0x4] sm:$0xf]
        %v2415 = vld [vmem:[#allocation2 + $0x8] sm:$0xf]
        %v2416 = vld [vmem:[#allocation2 + $0xc] sm:$0xf]
        %v2417 = vld [vmem:[#allocation2 + $0x10] sm:$0xf]
        %v2418 = vld [vmem:[#allocation2 + $0x14] sm:$0xf]
        %v2419 = vld [vmem:[#allocation2 + $0x18] sm:$0xf]
        %v2420 = vld [vmem:[#allocation2 + $0x1c] sm:$0xf]
        %v2421 = vld [vmem:[%s8] sm:$0x1]
        %v2423 = vlaneseq
        %v2424 = vshrl.u32 %v2423, 7
        %v2425 = vsub.s32 0, %v2424
        %v2426 = vrot.slane %v2421, %v2425
        %v2436 = vunpack.c.l.b16 %v2413
        %v2437 = vunpack.c.l.b16 %v2414
        %v2438 = vunpack.c.l.b16 %v2415
        %v2439 = vunpack.c.l.b16 %v2416
        %v2440 = vunpack.c.l.b16 %v2417
        %v2441 = vunpack.c.l.b16 %v2418
        %v2442 = vunpack.c.l.b16 %v2419
        %v2443 = vunpack.c.l.b16 %v2420
        %v2444 = vpack.c.b16 %v2437, %v2436
        %v2445 = vpack.c.b16 %v2439, %v2438
        %v2446 = vpack.c.b16 %v2441, %v2440
        %v2447 = vpack.c.b16 %v2443, %v2442
        %v2453 = vsel %vm1943, %v2412, 0
        %2455 = vmatprep.subr.bf16.mxu0 0
        %2456 = vmatpush1.bf16.msra.mxu0 0
        %2457 = vmatprep.subr.bf16.mxu0 0
        %2458 = vmatpush1.bf16.msra.mxu0 0
        %2459 = vmatprep.subr.bf16.mxu0 0
        %2460 = vmatpush1.bf16.msra.mxu0 0
        %2461 = vmatprep.subr.bf16.mxu0 0
        %2462 = vmatpush1.bf16.msra.mxu0 0
        %2463 = vmatprep.subr.bf16.mxu0 0
        %2464 = vmatpush1.bf16.msra.mxu0 %v2447
        %2465 = vmatprep.subr.bf16.mxu0 0
        %2466 = vmatpush1.bf16.msra.mxu0 %v2446
        %2467 = vmatprep.subr.bf16.mxu0 0
        %2468 = vmatpush1.bf16.msra.mxu0 %v2445
        %2469 = vmatprep.subr.bf16.mxu0 0
        %2470 = vmatpush1.bf16.msra.mxu0 %v2444
        %2471 = vmatprep.subr.bf16.mxu0 0
        %2472 = vmatpush2.bf16.msra.mxu0 0
        %2473 = vmatprep.subr.bf16.mxu0 0
        %2474 = vmatpush2.bf16.msra.mxu0 0
        %2475 = vmatprep.subr.bf16.mxu0 0
        %2476 = vmatpush2.bf16.msra.mxu0 0
        %2477 = vmatprep.subr.bf16.mxu0 0
        %2478 = vmatpush2.bf16.msra.mxu0 0
        %2479 = vmatprep.subr.bf16.mxu0 0
        %2480 = vmatpush2.bf16.msra.mxu0 0
        %2481 = vmatprep.subr.bf16.mxu0 0
        %2482 = vmatpush2.bf16.msra.mxu0 0
        %2483 = vmatprep.subr.bf16.mxu0 0
        %2484 = vmatpush2.bf16.msra.mxu0 0
        %2485 = vmatprep.subr.bf16.mxu0 0
        %2486 = vmatpush2.bf16.msra.mxu0 0
        %2487 = vmatprep.mubr.bf16.mxu0 0
        %2488 = vmatmul.mubr.bf16.gmra.mxu0 %v2453
        %v2489 = vpop.f32.mrf.mxu0
        %v2490 = vadd.f32 %v2426, %v2489
        %v2491 = vpop.f32.mrf.mxu0
        %v2492 = vpop.f32.mrf.mxu0
        %v2493 = vpop.f32.mrf.mxu0
        %2494 = vdwg.mxu0
        %2495 = vst [vmem:[%s341] sm:$0xff] %v2490
        %s2496 = sand.u32 %s226, 1
        %s2497 = scalar_lea.sflag [#allocation4], %s2496
        %s2498 = sand.u32 %s226, 1
        %s2499 = smul.addr %s2498, 8
        %s2500 = scalar_lea.vmem [#allocation5], %s2499
        // Predicated region
        $region61: #{tpu_custom_call.1} parent=55 // pred_check
          %p2501 = pneg %p236
        $region62: #{tpu_custom_call.1} parent=55 // pred_check_branch
          %2503 = sbr.rel (%p2501) target = $region64
        $region63: #{tpu_custom_call.1} parent=55 // pred_region
          %s2505 = ssub.s32 128, 128
          %2506 = vsyncadd %s2497, %s2505
          %s2507 = smul.addr %s24, 128
          %s2508 = scalar_lea.hbm %s9, %s2507
          %s2510 = sshll.u32 %s2500, 4
          %s2511 = int_to_ptr.vmem [resolvable:$true] %s2510
          %2513 = dma.vmem_to_hbm [thread:$0]  %s2511, 128, %s2508, %s2497
        $region64: #{tpu_custom_call.1} parent=55 // pred_fallthru
          _
      $region56: #{tpu_custom_call.1} parent=5 // pred_fallthru
        _
      %p2514 = scmp.le.s32.totalorder 2, %s19
      // Predicated region
      $region65: #{tpu_custom_call.1} parent=5 // pred_check
        %p2515 = pneg %p2514
      $region66: #{tpu_custom_call.1} parent=5 // pred_check_branch
        %2517 = sbr.rel (%p2515) target = $region68
      $region67: #{tpu_custom_call.1} parent=5 // pred_region
        %s2518 = ssub.s32 %s19, 2
        // Predicated region
        $region69: #{tpu_custom_call.1} parent=67 // pred_check
          %p2519 = pneg %p242
        $region70: #{tpu_custom_call.1} parent=67 // pred_check_branch
          %2521 = sbr.rel (%p2519) target = $region72
        $region71: #{tpu_custom_call.1} parent=67 // pred_region
          %s2522 = sand.u32 %s227, 1
          %s2523 = scalar_lea.sflag [#allocation4], %s2522
          %s2524 = sand.u32 %s227, 1
          %s2525 = smul.addr %s2524, 8
          %s2526 = scalar_lea.vmem [#allocation5], %s2525
          %2527 = dma.done %s2523, 128
        $region72: #{tpu_custom_call.1} parent=67 // pred_fallthru
          _
      $region68: #{tpu_custom_call.1} parent=5 // pred_fallthru
        _
    $region6: #{tpu_custom_call.1} parent=1 // loop_footer
      %s23 = sadd.s32 1, %s19
    $region7: #{tpu_custom_call.1} parent=1 // loop_footer_branch
      %18 = sbr.rel target = $region3
    $region8: #{tpu_custom_call.1} parent=1 // loop_exit
      _
    %2528 = vsyncpa [#allocation3], 1
    %s2529 = scalar_lea.sflag [#allocation3], 1
    %2530 = vsyncpa %s2529, 1
    %2531 = vsyncpa [#allocation4], 1
    %s2532 = scalar_lea.sflag [#allocation4], 1
    %2533 = vsyncpa %s2532, 1

</llo_original>
